<compile_context>
chip_gen: v7x
topology: tpu7x:2x2x1
jax: 0.10.0
libtpu: 0.0.40
codegen_flags: <defaults>
</compile_context>

<pallas_src>
import functools

import jax
import jax.numpy as jnp
import numpy as np
from jax import lax
from jax.experimental import pallas as pl
from jax.experimental.pallas import tpu as pltpu

_PAD = 128  # halo width on the flattened spatial axis; multiple of 128 keeps the
            # interior scratch store lane-aligned (must satisfy W + 1 <= _PAD)


def _resblock_kernel(masks_ref, x_ref, w1_ref, b1_ref, w2_ref, b2_ref, o_ref,
                     xe_ref, *, W, pad):
    """Fused ResBlock forward for one batch element.

    masks_ref: (9, H*W)          f32  VMEM  (1.0 where the tap's neighbour is in-bounds)
    x_ref    : (1, C, H*W)       f32  VMEM  (channels on sublanes, spatial on lanes)
    w1_ref   : (C, 9*C)          bf16 VMEM  (rows = out channel, cols = (kh, kw, cin))
    b1_ref   : (C, 1)            f32  VMEM
    w2_ref   : (C, 9*C)          bf16 VMEM
    b2_ref   : (C, 1)            f32  VMEM
    o_ref    : (1, C, H*W)       f32  VMEM
    xe_ref   : (C, pad+H*W+pad)  bf16 VMEM scratch (flat spatial axis with halo)
    """
    C = x_ref.shape[1]
    HW = x_ref.shape[2]

    x = x_ref[0]          # (C, HW) f32, lane-dense
    w1 = w1_ref[...]      # (C, 9*C) bf16, matmul-ready
    w2 = w2_ref[...]
    b1 = b1_ref[...]      # (C, 1) f32
    b2 = b2_ref[...]

    # Zero only the small halo of the flat scratch (two dense (C, pad) stores), not a
    # whole padded image each step.  The boundary taps are masked below anyway, so this
    # is purely defensive.
    xe_ref[:, 0:pad] = jnp.zeros((C, pad), xe_ref.dtype)
    xe_ref[:, pad + HW:pad + HW + pad] = jnp.zeros((C, pad), xe_ref.dtype)

    def conv3x3(src_f32, w_bf16, b_f32):
        # Write the (bf16) source into the interior of the halo scratch (lane-aligned,
        # dense store), then read the 9 taps as lane-shifted slices -- no reshapes.
        xe_ref[:, pad:pad + HW] = src_f32.astype(jnp.bfloat16)
        blocks = []
        for t in range(9):
            dh, dw = t // 3 - 1, t % 3 - 1
            start = pad + dh * W + dw
            blk = xe_ref[:, start:start + HW]               # (C, HW) bf16
            if dh == 0 and dw == 0:
                blocks.append(blk)                          # center tap: always valid
            else:
                valid = masks_ref[t:t + 1, :] != 0.0        # (1, HW) bool, broadcasts
                blocks.append(jnp.where(valid, blk, 0.0))
        patch = jnp.concatenate(blocks, axis=0)             # (9*C, HW) bf16, aligned
        # Single MXU matmul per conv: bf16 operands, f32 accumulation.
        acc = jnp.dot(w_bf16, patch, preferred_element_type=jnp.float32)  # (C, HW) f32
        return jnp.maximum(acc + b_f32, 0.0)                # bias + ReLU in f32 (VPU)

    t1 = conv3x3(x, w1, b1)
    t2 = conv3x3(t1, w2, b2)
    o_ref[0] = (t2 + x).astype(o_ref.dtype)                 # residual add, dense store


def _tap_masks(H, W):
    """(9, H*W) f32 validity masks for the 3x3 taps (replaces explicit zero padding)."""
    hh, ww = np.meshgrid(np.arange(H), np.arange(W), indexing="ij")
    hh = hh.reshape(-1)
    ww = ww.reshape(-1)
    masks = []
    for kh in range(3):
        for kw in range(3):
            dh, dw = kh - 1, kw - 1
            valid = ((hh + dh >= 0) & (hh + dh < H) &
                     (ww + dw >= 0) & (ww + dw < W))
            masks.append(valid)
    return np.stack(masks).astype(np.float32)


def resblock_forward(x_nchw, w1, b1, w2, b2):
    """ResBlock forward. x_nchw: (N, Cin, H, W); conv weights in HWIO layout."""
    N, Cin, H, W = x_nchw.shape
    Cout = w1.shape[-1]
    assert Cin == Cout, "ResBlock residual add requires in_channels == out_channels (32)"
    assert W + 1 <= _PAD
    HW = H * W

    # Channels-on-sublanes / spatial-on-lanes: NCHW -> (N, C, H*W) is a free reshape.
    x2 = x_nchw.reshape(N, Cin, HW).astype(jnp.float32)
    # Weights arrive matmul-ready: (Cout, 9*Cin), bf16 MXU operands.
    w1m = w1.reshape(9 * Cin, Cout).T.astype(jnp.bfloat16)
    w2m = w2.reshape(9 * Cout, Cout).T.astype(jnp.bfloat16)
    b1m = b1.reshape(Cout, 1).astype(jnp.float32)
    b2m = b2.reshape(Cout, 1).astype(jnp.float32)
    masks = jnp.asarray(_tap_masks(H, W))                   # (9, HW) f32

    kernel = functools.partial(_resblock_kernel, W=W, pad=_PAD)

    out = pl.pallas_call(
        kernel,
        out_shape=jax.ShapeDtypeStruct((N, Cout, HW), jnp.float32),
        grid_spec=pltpu.PrefetchScalarGridSpec(
            num_scalar_prefetch=0,
            grid=(N,),  # one batch element per step; "parallel" so v7x's 2 TCs split it
            in_specs=[
                pl.BlockSpec((9, HW), lambda n: (0, 0)),
                pl.BlockSpec((1, Cin, HW), lambda n: (n, 0, 0)),
                pl.BlockSpec((Cout, 9 * Cin), lambda n: (0, 0)),
                pl.BlockSpec((Cout, 1), lambda n: (0, 0)),
                pl.BlockSpec((Cout, 9 * Cout), lambda n: (0, 0)),
                pl.BlockSpec((Cout, 1), lambda n: (0, 0)),
            ],
            out_specs=pl.BlockSpec((1, Cout, HW), lambda n: (n, 0, 0)),
            scratch_shapes=[
                pltpu.VMEM((Cout, 2 * _PAD + HW), jnp.bfloat16),
            ],
        ),
        compiler_params=pltpu.CompilerParams(
            dimension_semantics=("parallel",)),
    )(masks, x2, w1m, b1m, w2m, b2m)

    return out.reshape(N, Cout, H, W)


def _reference_forward(x_nchw, w1, b1, w2, b2):
    """Pure-JAX reference: bf16 conv operands, f32 accumulation (mirrors the kernel)."""
    x = jnp.transpose(x_nchw, (0, 2, 3, 1)).astype(jnp.float32)
    dn = ("NHWC", "HWIO", "NHWC")

    def conv(inp, w, b):
        y = lax.conv_general_dilated(
            inp.astype(jnp.bfloat16), w.astype(jnp.bfloat16),
            (1, 1), ((1, 1), (1, 1)),
            dimension_numbers=dn, preferred_element_type=jnp.float32)
        return y + b

    t = jnp.maximum(conv(x, w1, b1), 0.0)
    t = jnp.maximum(conv(t, w2, b2), 0.0)
    t = t + x
    return jnp.transpose(t, (0, 3, 1, 2))


def _init_params(key, in_channels, out_channels=32):
    """Deterministic init mimicking the PyTorch module (kaiming_normal_ weights,
    default uniform conv biases)."""
    k1, k2, k3, k4 = jax.random.split(key, 4)
    fan_in1 = in_channels * 9
    fan_in2 = out_channels * 9
    w1 = jax.random.normal(k1, (3, 3, in_channels, out_channels),
                           jnp.float32) * np.sqrt(2.0 / fan_in1)
    w2 = jax.random.normal(k2, (3, 3, out_channels, out_channels),
                           jnp.float32) * np.sqrt(2.0 / fan_in2)
    b1 = jax.random.uniform(k3, (out_channels,), jnp.float32,
                            -1.0 / np.sqrt(fan_in1), 1.0 / np.sqrt(fan_in1))
    b2 = jax.random.uniform(k4, (out_channels,), jnp.float32,
                            -1.0 / np.sqrt(fan_in2), 1.0 / np.sqrt(fan_in2))
    return w1, b1, w2, b2


if __name__ == "__main__":
    key = jax.random.PRNGKey(0)
    kx, kp = jax.random.split(key)

    N, C, H, W = 2, 32, 16, 16  # in_channels must be 32 for the residual add
    x = jax.random.normal(kx, (N, C, H, W), jnp.float32)
    w1, b1, w2, b2 = _init_params(kp, C)

    out = jax.block_until_ready(
        jax.jit(resblock_forward)(x, w1, b1, w2, b2))
    ref = jax.block_until_ready(
        jax.jit(_reference_forward)(x, w1, b1, w2, b2))

    # bf16 MXU operands in both kernel and reference -> modest tolerance.
    np.testing.assert_allclose(np.asarray(out), np.asarray(ref),
                               rtol=1e-2, atol=1e-2)
    print("KERNEL_OK")
</pallas_src>

<mosaic_0001>
module attributes {stable_mosaic.version = 11 : i64} {
  func.func @_resblock_kernel(%arg0: i32, %arg1: memref<9x256xf32, #tpu.memory_space<vmem>>, %arg2: memref<1x32x256xf32, #tpu.memory_space<vmem>>, %arg3: memref<32x288xbf16, #tpu.memory_space<vmem>>, %arg4: memref<32x1xf32, #tpu.memory_space<vmem>>, %arg5: memref<32x288xbf16, #tpu.memory_space<vmem>>, %arg6: memref<32x1xf32, #tpu.memory_space<vmem>>, %arg7: memref<1x32x256xf32, #tpu.memory_space<vmem>>, %arg8: memref<32x512xbf16, #tpu.memory_space<vmem>>) attributes {dimension_semantics = [#tpu.dimension_semantics<parallel>], iteration_bounds = array<i64: 2>, scalar_prefetch = 0 : i64, scratch_operands = 1 : i64, tpu.core_type = #tpu.core_type<tc>, window_params = [{pipeline_mode = #tpu.pipeline_mode<synchronous>, transform_indices = @transform_0, window_bounds = array<i64: 9, 256>}, {transform_indices = @transform_1, window_bounds = array<i64: 1, 32, 256>}, {pipeline_mode = #tpu.pipeline_mode<synchronous>, transform_indices = @transform_2, window_bounds = array<i64: 32, 288>}, {pipeline_mode = #tpu.pipeline_mode<synchronous>, transform_indices = @transform_3, window_bounds = array<i64: 32, 1>}, {pipeline_mode = #tpu.pipeline_mode<synchronous>, transform_indices = @transform_4, window_bounds = array<i64: 32, 288>}, {pipeline_mode = #tpu.pipeline_mode<synchronous>, transform_indices = @transform_5, window_bounds = array<i64: 32, 1>}, {transform_indices = @transform_6, window_bounds = array<i64: 1, 32, 256>}]} {
    %c0 = arith.constant 0 : index
    %c0_0 = arith.constant 0 : index
    %c0_1 = arith.constant 0 : index
    %0 = vector.load %arg2[%c0, %c0_0, %c0_1] : memref<1x32x256xf32, #tpu.memory_space<vmem>>, vector<1x32x256xf32>
    %1 = vector.shape_cast %0 : vector<1x32x256xf32> to vector<32x256xf32>
    %c0_2 = arith.constant 0 : index
    %c0_3 = arith.constant 0 : index
    %2 = vector.load %arg3[%c0_2, %c0_3] : memref<32x288xbf16, #tpu.memory_space<vmem>>, vector<32x288xbf16>
    %c0_4 = arith.constant 0 : index
    %c0_5 = arith.constant 0 : index
    %3 = vector.load %arg5[%c0_4, %c0_5] : memref<32x288xbf16, #tpu.memory_space<vmem>>, vector<32x288xbf16>
    %c0_6 = arith.constant 0 : index
    %c0_7 = arith.constant 0 : index
    %4 = vector.load %arg4[%c0_6, %c0_7] : memref<32x1xf32, #tpu.memory_space<vmem>>, vector<32x1xf32>
    %c0_8 = arith.constant 0 : index
    %c0_9 = arith.constant 0 : index
    %5 = vector.load %arg6[%c0_8, %c0_9] : memref<32x1xf32, #tpu.memory_space<vmem>>, vector<32x1xf32>
    %cst = arith.constant 0.000000e+00 : bf16
    %6 = vector.broadcast %cst : bf16 to vector<32x128xbf16>
    %c0_10 = arith.constant 0 : index
    %c0_11 = arith.constant 0 : index
    %7 = vector.load %arg8[%c0_10, %c0_11] : memref<32x512xbf16, #tpu.memory_space<vmem>>, vector<32x128xbf16>
    tpu.vector_store %arg8[%c0_10, %c0_11], %6 {strides = array<i32>} : memref<32x512xbf16, #tpu.memory_space<vmem>>, vector<32x128xbf16>,
    %cst_12 = arith.constant 0.000000e+00 : bf16
    %8 = vector.broadcast %cst_12 : bf16 to vector<32x128xbf16>
    %c0_13 = arith.constant 0 : index
    %c384 = arith.constant 384 : index
    %9 = vector.load %arg8[%c0_13, %c384] : memref<32x512xbf16, #tpu.memory_space<vmem>>, vector<32x128xbf16>
    tpu.vector_store %arg8[%c0_13, %c384], %8 {strides = array<i32>} : memref<32x512xbf16, #tpu.memory_space<vmem>>, vector<32x128xbf16>,
    %10 = arith.truncf %1 : vector<32x256xf32> to vector<32x256xbf16>
    %c0_14 = arith.constant 0 : index
    %c128 = arith.constant 128 : index
    %11 = vector.load %arg8[%c0_14, %c128] : memref<32x512xbf16, #tpu.memory_space<vmem>>, vector<32x256xbf16>
    tpu.vector_store %arg8[%c0_14, %c128], %10 {strides = array<i32>} : memref<32x512xbf16, #tpu.memory_space<vmem>>, vector<32x256xbf16>,
    %c0_15 = arith.constant 0 : index
    %c111 = arith.constant 111 : index
    %12 = vector.load %arg8[%c0_15, %c111] : memref<32x512xbf16, #tpu.memory_space<vmem>>, vector<32x256xbf16>
    %c0_16 = arith.constant 0 : index
    %c0_17 = arith.constant 0 : index
    %13 = vector.load %arg1[%c0_16, %c0_17] : memref<9x256xf32, #tpu.memory_space<vmem>>, vector<1x256xf32>
    %cst_18 = arith.constant 0.000000e+00 : f32
    %14 = vector.broadcast %cst_18 : f32 to vector<1x256xf32>
    %15 = arith.cmpf one, %13, %14 : vector<1x256xf32>
    %cst_19 = arith.constant 0.000000e+00 : f32
    %16 = arith.truncf %cst_19 : f32 to bf16
    %17 = vector.shape_cast %15 : vector<1x256xi1> to vector<1x256xi1>
    %18 = vector.broadcast %17 : vector<1x256xi1> to vector<32x256xi1>
    %19 = vector.broadcast %16 : bf16 to vector<32x256xbf16>
    %20 = arith.select %18, %12, %19 : vector<32x256xi1>, vector<32x256xbf16>
    %c0_20 = arith.constant 0 : index
    %c112 = arith.constant 112 : index
    %21 = vector.load %arg8[%c0_20, %c112] : memref<32x512xbf16, #tpu.memory_space<vmem>>, vector<32x256xbf16>
    %c1 = arith.constant 1 : index
    %c0_21 = arith.constant 0 : index
    %22 = vector.load %arg1[%c1, %c0_21] : memref<9x256xf32, #tpu.memory_space<vmem>>, vector<1x256xf32>
    %cst_22 = arith.constant 0.000000e+00 : f32
    %23 = vector.broadcast %cst_22 : f32 to vector<1x256xf32>
    %24 = arith.cmpf one, %22, %23 : vector<1x256xf32>
    %cst_23 = arith.constant 0.000000e+00 : f32
    %25 = arith.truncf %cst_23 : f32 to bf16
    %26 = vector.shape_cast %24 : vector<1x256xi1> to vector<1x256xi1>
    %27 = vector.broadcast %26 : vector<1x256xi1> to vector<32x256xi1>
    %28 = vector.broadcast %25 : bf16 to vector<32x256xbf16>
    %29 = arith.select %27, %21, %28 : vector<32x256xi1>, vector<32x256xbf16>
    %c0_24 = arith.constant 0 : index
    %c113 = arith.constant 113 : index
    %30 = vector.load %arg8[%c0_24, %c113] : memref<32x512xbf16, #tpu.memory_space<vmem>>, vector<32x256xbf16>
    %c2 = arith.constant 2 : index
    %c0_25 = arith.constant 0 : index
    %31 = vector.load %arg1[%c2, %c0_25] : memref<9x256xf32, #tpu.memory_space<vmem>>, vector<1x256xf32>
    %cst_26 = arith.constant 0.000000e+00 : f32
    %32 = vector.broadcast %cst_26 : f32 to vector<1x256xf32>
    %33 = arith.cmpf one, %31, %32 : vector<1x256xf32>
    %cst_27 = arith.constant 0.000000e+00 : f32
    %34 = arith.truncf %cst_27 : f32 to bf16
    %35 = vector.shape_cast %33 : vector<1x256xi1> to vector<1x256xi1>
    %36 = vector.broadcast %35 : vector<1x256xi1> to vector<32x256xi1>
    %37 = vector.broadcast %34 : bf16 to vector<32x256xbf16>
    %38 = arith.select %36, %30, %37 : vector<32x256xi1>, vector<32x256xbf16>
    %c0_28 = arith.constant 0 : index
    %c127 = arith.constant 127 : index
    %39 = vector.load %arg8[%c0_28, %c127] : memref<32x512xbf16, #tpu.memory_space<vmem>>, vector<32x256xbf16>
    %c3 = arith.constant 3 : index
    %c0_29 = arith.constant 0 : index
    %40 = vector.load %arg1[%c3, %c0_29] : memref<9x256xf32, #tpu.memory_space<vmem>>, vector<1x256xf32>
    %cst_30 = arith.constant 0.000000e+00 : f32
    %41 = vector.broadcast %cst_30 : f32 to vector<1x256xf32>
    %42 = arith.cmpf one, %40, %41 : vector<1x256xf32>
    %cst_31 = arith.constant 0.000000e+00 : f32
    %43 = arith.truncf %cst_31 : f32 to bf16
    %44 = vector.shape_cast %42 : vector<1x256xi1> to vector<1x256xi1>
    %45 = vector.broadcast %44 : vector<1x256xi1> to vector<32x256xi1>
    %46 = vector.broadcast %43 : bf16 to vector<32x256xbf16>
    %47 = arith.select %45, %39, %46 : vector<32x256xi1>, vector<32x256xbf16>
    %c0_32 = arith.constant 0 : index
    %c128_33 = arith.constant 128 : index
    %48 = vector.load %arg8[%c0_32, %c128_33] : memref<32x512xbf16, #tpu.memory_space<vmem>>, vector<32x256xbf16>
    %c0_34 = arith.constant 0 : index
    %c129 = arith.constant 129 : index
    %49 = vector.load %arg8[%c0_34, %c129] : memref<32x512xbf16, #tpu.memory_space<vmem>>, vector<32x256xbf16>
    %c5 = arith.constant 5 : index
    %c0_35 = arith.constant 0 : index
    %50 = vector.load %arg1[%c5, %c0_35] : memref<9x256xf32, #tpu.memory_space<vmem>>, vector<1x256xf32>
    %cst_36 = arith.constant 0.000000e+00 : f32
    %51 = vector.broadcast %cst_36 : f32 to vector<1x256xf32>
    %52 = arith.cmpf one, %50, %51 : vector<1x256xf32>
    %cst_37 = arith.constant 0.000000e+00 : f32
    %53 = arith.truncf %cst_37 : f32 to bf16
    %54 = vector.shape_cast %52 : vector<1x256xi1> to vector<1x256xi1>
    %55 = vector.broadcast %54 : vector<1x256xi1> to vector<32x256xi1>
    %56 = vector.broadcast %53 : bf16 to vector<32x256xbf16>
    %57 = arith.select %55, %49, %56 : vector<32x256xi1>, vector<32x256xbf16>
    %c0_38 = arith.constant 0 : index
    %c143 = arith.constant 143 : index
    %58 = vector.load %arg8[%c0_38, %c143] : memref<32x512xbf16, #tpu.memory_space<vmem>>, vector<32x256xbf16>
    %c6 = arith.constant 6 : index
    %c0_39 = arith.constant 0 : index
    %59 = vector.load %arg1[%c6, %c0_39] : memref<9x256xf32, #tpu.memory_space<vmem>>, vector<1x256xf32>
    %cst_40 = arith.constant 0.000000e+00 : f32
    %60 = vector.broadcast %cst_40 : f32 to vector<1x256xf32>
    %61 = arith.cmpf one, %59, %60 : vector<1x256xf32>
    %cst_41 = arith.constant 0.000000e+00 : f32
    %62 = arith.truncf %cst_41 : f32 to bf16
    %63 = vector.shape_cast %61 : vector<1x256xi1> to vector<1x256xi1>
    %64 = vector.broadcast %63 : vector<1x256xi1> to vector<32x256xi1>
    %65 = vector.broadcast %62 : bf16 to vector<32x256xbf16>
    %66 = arith.select %64, %58, %65 : vector<32x256xi1>, vector<32x256xbf16>
    %c0_42 = arith.constant 0 : index
    %c144 = arith.constant 144 : index
    %67 = vector.load %arg8[%c0_42, %c144] : memref<32x512xbf16, #tpu.memory_space<vmem>>, vector<32x256xbf16>
    %c7 = arith.constant 7 : index
    %c0_43 = arith.constant 0 : index
    %68 = vector.load %arg1[%c7, %c0_43] : memref<9x256xf32, #tpu.memory_space<vmem>>, vector<1x256xf32>
    %cst_44 = arith.constant 0.000000e+00 : f32
    %69 = vector.broadcast %cst_44 : f32 to vector<1x256xf32>
    %70 = arith.cmpf one, %68, %69 : vector<1x256xf32>
    %cst_45 = arith.constant 0.000000e+00 : f32
    %71 = arith.truncf %cst_45 : f32 to bf16
    %72 = vector.shape_cast %70 : vector<1x256xi1> to vector<1x256xi1>
    %73 = vector.broadcast %72 : vector<1x256xi1> to vector<32x256xi1>
    %74 = vector.broadcast %71 : bf16 to vector<32x256xbf16>
    %75 = arith.select %73, %67, %74 : vector<32x256xi1>, vector<32x256xbf16>
    %c0_46 = arith.constant 0 : index
    %c145 = arith.constant 145 : index
    %76 = vector.load %arg8[%c0_46, %c145] : memref<32x512xbf16, #tpu.memory_space<vmem>>, vector<32x256xbf16>
    %c8 = arith.constant 8 : index
    %c0_47 = arith.constant 0 : index
    %77 = vector.load %arg1[%c8, %c0_47] : memref<9x256xf32, #tpu.memory_space<vmem>>, vector<1x256xf32>
    %cst_48 = arith.constant 0.000000e+00 : f32
    %78 = vector.broadcast %cst_48 : f32 to vector<1x256xf32>
    %79 = arith.cmpf one, %77, %78 : vector<1x256xf32>
    %cst_49 = arith.constant 0.000000e+00 : f32
    %80 = arith.truncf %cst_49 : f32 to bf16
    %81 = vector.shape_cast %79 : vector<1x256xi1> to vector<1x256xi1>
    %82 = vector.broadcast %81 : vector<1x256xi1> to vector<32x256xi1>
    %83 = vector.broadcast %80 : bf16 to vector<32x256xbf16>
    %84 = arith.select %82, %76, %83 : vector<32x256xi1>, vector<32x256xbf16>
    %85 = tpu.concatenate %20, %29, %38, %47, %48, %57, %66, %75, %84 in 0 : vector<32x256xbf16>, vector<32x256xbf16>, vector<32x256xbf16>, vector<32x256xbf16>, vector<32x256xbf16>, vector<32x256xbf16>, vector<32x256xbf16>, vector<32x256xbf16>, vector<32x256xbf16> -> vector<288x256xbf16>
    %cst_50 = arith.constant dense<0.000000e+00> : vector<32x256xf32>
    %86 = tpu.matmul %2, %85, %cst_50 {dimension_numbers = #tpu.dot_dimension_numbers<[1], [0], [0], [1], [0, 0, 1, 1], [], []>} : vector<32x288xbf16>, vector<288x256xbf16>, vector<32x256xf32> -> vector<32x256xf32>
    %87 = vector.broadcast %4 : vector<32x1xf32> to vector<32x256xf32>
    %88 = arith.addf %86, %87 : vector<32x256xf32>
    %cst_51 = arith.constant 0.000000e+00 : f32
    %89 = vector.broadcast %cst_51 : f32 to vector<32x256xf32>
    %90 = arith.maximumf %88, %89 : vector<32x256xf32>
    %91 = arith.truncf %90 : vector<32x256xf32> to vector<32x256xbf16>
    %c0_52 = arith.constant 0 : index
    %c128_53 = arith.constant 128 : index
    %92 = vector.load %arg8[%c0_52, %c128_53] : memref<32x512xbf16, #tpu.memory_space<vmem>>, vector<32x256xbf16>
    tpu.vector_store %arg8[%c0_52, %c128_53], %91 {strides = array<i32>} : memref<32x512xbf16, #tpu.memory_space<vmem>>, vector<32x256xbf16>,
    %c0_54 = arith.constant 0 : index
    %c111_55 = arith.constant 111 : index
    %93 = vector.load %arg8[%c0_54, %c111_55] : memref<32x512xbf16, #tpu.memory_space<vmem>>, vector<32x256xbf16>
    %c0_56 = arith.constant 0 : index
    %c0_57 = arith.constant 0 : index
    %94 = vector.load %arg1[%c0_56, %c0_57] : memref<9x256xf32, #tpu.memory_space<vmem>>, vector<1x256xf32>
    %cst_58 = arith.constant 0.000000e+00 : f32
    %95 = vector.broadcast %cst_58 : f32 to vector<1x256xf32>
    %96 = arith.cmpf one, %94, %95 : vector<1x256xf32>
    %cst_59 = arith.constant 0.000000e+00 : f32
    %97 = arith.truncf %cst_59 : f32 to bf16
    %98 = vector.shape_cast %96 : vector<1x256xi1> to vector<1x256xi1>
    %99 = vector.broadcast %98 : vector<1x256xi1> to vector<32x256xi1>
    %100 = vector.broadcast %97 : bf16 to vector<32x256xbf16>
    %101 = arith.select %99, %93, %100 : vector<32x256xi1>, vector<32x256xbf16>
    %c0_60 = arith.constant 0 : index
    %c112_61 = arith.constant 112 : index
    %102 = vector.load %arg8[%c0_60, %c112_61] : memref<32x512xbf16, #tpu.memory_space<vmem>>, vector<32x256xbf16>
    %c1_62 = arith.constant 1 : index
    %c0_63 = arith.constant 0 : index
    %103 = vector.load %arg1[%c1_62, %c0_63] : memref<9x256xf32, #tpu.memory_space<vmem>>, vector<1x256xf32>
    %cst_64 = arith.constant 0.000000e+00 : f32
    %104 = vector.broadcast %cst_64 : f32 to vector<1x256xf32>
    %105 = arith.cmpf one, %103, %104 : vector<1x256xf32>
    %cst_65 = arith.constant 0.000000e+00 : f32
    %106 = arith.truncf %cst_65 : f32 to bf16
    %107 = vector.shape_cast %105 : vector<1x256xi1> to vector<1x256xi1>
    %108 = vector.broadcast %107 : vector<1x256xi1> to vector<32x256xi1>
    %109 = vector.broadcast %106 : bf16 to vector<32x256xbf16>
    %110 = arith.select %108, %102, %109 : vector<32x256xi1>, vector<32x256xbf16>
    %c0_66 = arith.constant 0 : index
    %c113_67 = arith.constant 113 : index
    %111 = vector.load %arg8[%c0_66, %c113_67] : memref<32x512xbf16, #tpu.memory_space<vmem>>, vector<32x256xbf16>
    %c2_68 = arith.constant 2 : index
    %c0_69 = arith.constant 0 : index
    %112 = vector.load %arg1[%c2_68, %c0_69] : memref<9x256xf32, #tpu.memory_space<vmem>>, vector<1x256xf32>
    %cst_70 = arith.constant 0.000000e+00 : f32
    %113 = vector.broadcast %cst_70 : f32 to vector<1x256xf32>
    %114 = arith.cmpf one, %112, %113 : vector<1x256xf32>
    %cst_71 = arith.constant 0.000000e+00 : f32
    %115 = arith.truncf %cst_71 : f32 to bf16
    %116 = vector.shape_cast %114 : vector<1x256xi1> to vector<1x256xi1>
    %117 = vector.broadcast %116 : vector<1x256xi1> to vector<32x256xi1>
    %118 = vector.broadcast %115 : bf16 to vector<32x256xbf16>
    %119 = arith.select %117, %111, %118 : vector<32x256xi1>, vector<32x256xbf16>
    %c0_72 = arith.constant 0 : index
    %c127_73 = arith.constant 127 : index
    %120 = vector.load %arg8[%c0_72, %c127_73] : memref<32x512xbf16, #tpu.memory_space<vmem>>, vector<32x256xbf16>
    %c3_74 = arith.constant 3 : index
    %c0_75 = arith.constant 0 : index
    %121 = vector.load %arg1[%c3_74, %c0_75] : memref<9x256xf32, #tpu.memory_space<vmem>>, vector<1x256xf32>
    %cst_76 = arith.constant 0.000000e+00 : f32
    %122 = vector.broadcast %cst_76 : f32 to vector<1x256xf32>
    %123 = arith.cmpf one, %121, %122 : vector<1x256xf32>
    %cst_77 = arith.constant 0.000000e+00 : f32
    %124 = arith.truncf %cst_77 : f32 to bf16
    %125 = vector.shape_cast %123 : vector<1x256xi1> to vector<1x256xi1>
    %126 = vector.broadcast %125 : vector<1x256xi1> to vector<32x256xi1>
    %127 = vector.broadcast %124 : bf16 to vector<32x256xbf16>
    %128 = arith.select %126, %120, %127 : vector<32x256xi1>, vector<32x256xbf16>
    %c0_78 = arith.constant 0 : index
    %c128_79 = arith.constant 128 : index
    %129 = vector.load %arg8[%c0_78, %c128_79] : memref<32x512xbf16, #tpu.memory_space<vmem>>, vector<32x256xbf16>
    %c0_80 = arith.constant 0 : index
    %c129_81 = arith.constant 129 : index
    %130 = vector.load %arg8[%c0_80, %c129_81] : memref<32x512xbf16, #tpu.memory_space<vmem>>, vector<32x256xbf16>
    %c5_82 = arith.constant 5 : index
    %c0_83 = arith.constant 0 : index
    %131 = vector.load %arg1[%c5_82, %c0_83] : memref<9x256xf32, #tpu.memory_space<vmem>>, vector<1x256xf32>
    %cst_84 = arith.constant 0.000000e+00 : f32
    %132 = vector.broadcast %cst_84 : f32 to vector<1x256xf32>
    %133 = arith.cmpf one, %131, %132 : vector<1x256xf32>
    %cst_85 = arith.constant 0.000000e+00 : f32
    %134 = arith.truncf %cst_85 : f32 to bf16
    %135 = vector.shape_cast %133 : vector<1x256xi1> to vector<1x256xi1>
    %136 = vector.broadcast %135 : vector<1x256xi1> to vector<32x256xi1>
    %137 = vector.broadcast %134 : bf16 to vector<32x256xbf16>
    %138 = arith.select %136, %130, %137 : vector<32x256xi1>, vector<32x256xbf16>
    %c0_86 = arith.constant 0 : index
    %c143_87 = arith.constant 143 : index
    %139 = vector.load %arg8[%c0_86, %c143_87] : memref<32x512xbf16, #tpu.memory_space<vmem>>, vector<32x256xbf16>
    %c6_88 = arith.constant 6 : index
    %c0_89 = arith.constant 0 : index
    %140 = vector.load %arg1[%c6_88, %c0_89] : memref<9x256xf32, #tpu.memory_space<vmem>>, vector<1x256xf32>
    %cst_90 = arith.constant 0.000000e+00 : f32
    %141 = vector.broadcast %cst_90 : f32 to vector<1x256xf32>
    %142 = arith.cmpf one, %140, %141 : vector<1x256xf32>
    %cst_91 = arith.constant 0.000000e+00 : f32
    %143 = arith.truncf %cst_91 : f32 to bf16
    %144 = vector.shape_cast %142 : vector<1x256xi1> to vector<1x256xi1>
    %145 = vector.broadcast %144 : vector<1x256xi1> to vector<32x256xi1>
    %146 = vector.broadcast %143 : bf16 to vector<32x256xbf16>
    %147 = arith.select %145, %139, %146 : vector<32x256xi1>, vector<32x256xbf16>
    %c0_92 = arith.constant 0 : index
    %c144_93 = arith.constant 144 : index
    %148 = vector.load %arg8[%c0_92, %c144_93] : memref<32x512xbf16, #tpu.memory_space<vmem>>, vector<32x256xbf16>
    %c7_94 = arith.constant 7 : index
    %c0_95 = arith.constant 0 : index
    %149 = vector.load %arg1[%c7_94, %c0_95] : memref<9x256xf32, #tpu.memory_space<vmem>>, vector<1x256xf32>
    %cst_96 = arith.constant 0.000000e+00 : f32
    %150 = vector.broadcast %cst_96 : f32 to vector<1x256xf32>
    %151 = arith.cmpf one, %149, %150 : vector<1x256xf32>
    %cst_97 = arith.constant 0.000000e+00 : f32
    %152 = arith.truncf %cst_97 : f32 to bf16
    %153 = vector.shape_cast %151 : vector<1x256xi1> to vector<1x256xi1>
    %154 = vector.broadcast %153 : vector<1x256xi1> to vector<32x256xi1>
    %155 = vector.broadcast %152 : bf16 to vector<32x256xbf16>
    %156 = arith.select %154, %148, %155 : vector<32x256xi1>, vector<32x256xbf16>
    %c0_98 = arith.constant 0 : index
    %c145_99 = arith.constant 145 : index
    %157 = vector.load %arg8[%c0_98, %c145_99] : memref<32x512xbf16, #tpu.memory_space<vmem>>, vector<32x256xbf16>
    %c8_100 = arith.constant 8 : index
    %c0_101 = arith.constant 0 : index
    %158 = vector.load %arg1[%c8_100, %c0_101] : memref<9x256xf32, #tpu.memory_space<vmem>>, vector<1x256xf32>
    %cst_102 = arith.constant 0.000000e+00 : f32
    %159 = vector.broadcast %cst_102 : f32 to vector<1x256xf32>
    %160 = arith.cmpf one, %158, %159 : vector<1x256xf32>
    %cst_103 = arith.constant 0.000000e+00 : f32
    %161 = arith.truncf %cst_103 : f32 to bf16
    %162 = vector.shape_cast %160 : vector<1x256xi1> to vector<1x256xi1>
    %163 = vector.broadcast %162 : vector<1x256xi1> to vector<32x256xi1>
    %164 = vector.broadcast %161 : bf16 to vector<32x256xbf16>
    %165 = arith.select %163, %157, %164 : vector<32x256xi1>, vector<32x256xbf16>
    %166 = tpu.concatenate %101, %110, %119, %128, %129, %138, %147, %156, %165 in 0 : vector<32x256xbf16>, vector<32x256xbf16>, vector<32x256xbf16>, vector<32x256xbf16>, vector<32x256xbf16>, vector<32x256xbf16>, vector<32x256xbf16>, vector<32x256xbf16>, vector<32x256xbf16> -> vector<288x256xbf16>
    %cst_104 = arith.constant dense<0.000000e+00> : vector<32x256xf32>
    %167 = tpu.matmul %3, %166, %cst_104 {dimension_numbers = #tpu.dot_dimension_numbers<[1], [0], [0], [1], [0, 0, 1, 1], [], []>} : vector<32x288xbf16>, vector<288x256xbf16>, vector<32x256xf32> -> vector<32x256xf32>
    %168 = vector.broadcast %5 : vector<32x1xf32> to vector<32x256xf32>
    %169 = arith.addf %167, %168 : vector<32x256xf32>
    %cst_105 = arith.constant 0.000000e+00 : f32
    %170 = vector.broadcast %cst_105 : f32 to vector<32x256xf32>
    %171 = arith.maximumf %169, %170 : vector<32x256xf32>
    %172 = arith.addf %171, %1 : vector<32x256xf32>
    %c0_106 = arith.constant 0 : index
    %c0_107 = arith.constant 0 : index
    %c0_108 = arith.constant 0 : index
    %173 = vector.load %arg7[%c0_106, %c0_107, %c0_108] : memref<1x32x256xf32, #tpu.memory_space<vmem>>, vector<1x32x256xf32>
    %174 = vector.shape_cast %173 : vector<1x32x256xf32> to vector<32x256xf32>
    %175 = vector.shape_cast %172 : vector<32x256xf32> to vector<1x32x256xf32>
    tpu.vector_store %arg7[%c0_106, %c0_107, %c0_108], %175 {strides = array<i32>} : memref<1x32x256xf32, #tpu.memory_space<vmem>>, vector<1x32x256xf32>,
    return
  }
  func.func @transform_0(%arg0: i32) -> (i32, i32) {
    %c0_i32 = arith.constant 0 : i32
    %c0_i32_0 = arith.constant 0 : i32
    %c0_i32_1 = arith.constant 0 : i32
    return %c0_i32, %c0_i32_0 : i32, i32
  }
  func.func @transform_1(%arg0: i32) -> (i32, i32, i32) {
    %c0_i32 = arith.constant 0 : i32
    %c0_i32_0 = arith.constant 0 : i32
    %c0_i32_1 = arith.constant 0 : i32
    return %arg0, %c0_i32, %c0_i32_0 : i32, i32, i32
  }
  func.func @transform_2(%arg0: i32) -> (i32, i32) {
    %c0_i32 = arith.constant 0 : i32
    %c0_i32_0 = arith.constant 0 : i32
    %c0_i32_1 = arith.constant 0 : i32
    return %c0_i32, %c0_i32_0 : i32, i32
  }
  func.func @transform_3(%arg0: i32) -> (i32, i32) {
    %c0_i32 = arith.constant 0 : i32
    %c0_i32_0 = arith.constant 0 : i32
    %c0_i32_1 = arith.constant 0 : i32
    return %c0_i32, %c0_i32_0 : i32, i32
  }
  func.func @transform_4(%arg0: i32) -> (i32, i32) {
    %c0_i32 = arith.constant 0 : i32
    %c0_i32_0 = arith.constant 0 : i32
    %c0_i32_1 = arith.constant 0 : i32
    return %c0_i32, %c0_i32_0 : i32, i32
  }
  func.func @transform_5(%arg0: i32) -> (i32, i32) {
    %c0_i32 = arith.constant 0 : i32
    %c0_i32_0 = arith.constant 0 : i32
    %c0_i32_1 = arith.constant 0 : i32
    return %c0_i32, %c0_i32_0 : i32, i32
  }
  func.func @transform_6(%arg0: i32) -> (i32, i32, i32) {
    %c0_i32 = arith.constant 0 : i32
    %c0_i32_0 = arith.constant 0 : i32
    %c0_i32_1 = arith.constant 0 : i32
    return %arg0, %c0_i32, %c0_i32_0 : i32, i32, i32
  }
}

</mosaic_0001>

<llo_original>
// kernel: resblock_forward.1
$region0: #{resblock_forward.1}
  #allocation0 [shape = 'u32[]', space=smem, size = 0x4, offset = 0x4, fixed_abs, tag = 'smem constant byte address 0x4 - core index']
  #allocation1 [shape = 'u32[144,128]{1,0:T(1,128)}', space=vmem, size = 0x12000, scoped, tag = 'internal scratch']
  #allocation2 [shape = 'bf16[32,512]{1,0:T(16,128)(2,1)}', space=vmem, size = 0x8000, scoped, tag = 'scratch operand']
  %s0 = inlined_call_operand.vmem [shape: f32[9,256], index: 0, kind: input, shape index: {}]
  %s1 = inlined_call_operand.vmem [shape: f32[2,32,256], index: 1, kind: input, shape index: {}]
  %s2 = inlined_call_operand.vmem [shape: bf16[32,288], index: 2, kind: input, shape index: {}]
  %s3 = inlined_call_operand.vmem [shape: f32[32,1], index: 3, kind: input, shape index: {}]
  %s4 = inlined_call_operand.vmem [shape: bf16[32,288], index: 4, kind: input, shape index: {}]
  %s5 = inlined_call_operand.vmem [shape: f32[32,1], index: 5, kind: input, shape index: {}]
  %s6 = inlined_call_operand.vmem [shape: f32[2,32,256], index: 6, kind: output, shape index: {}]
  %s7 = sld [smem:[#allocation0]]
  $region57: #{resblock_forward.1} parent=0
    _
  %s9 = ssub.s32 1, %s7
  %s10 = scalar_select 0, %s9, %s7
  loop: start=0, step=1, limit=4
  $region2: #{resblock_forward.1} parent=0 // loop_pre_header
    _
  $region3: #{resblock_forward.1} parent=0 // loop_header
    %s12 = sphi 0, %s16
    %p13 = scmp.ge.s32.totalorder %s12, 4
    %s20 = sphi 0, %s20
    %s22 = sphi 0, %s20
    %s23 = sphi 0, %s22
    %s37 = sphi 0, %s23
    %s43 = sphi 0, %s45
    %s46 = sphi 0, %s43
    %s47 = sphi 0, %s46
    %s63 = sphi 0, %s47
    %s67 = sphi 0, %s67
    %s69 = sphi 0, %s67
    %s70 = sphi 0, %s69
    %s84 = sphi 0, %s70
    %s88 = sphi 0, %s88
    %s90 = sphi 0, %s88
    %s91 = sphi 0, %s90
    %s105 = sphi 0, %s91
    %s109 = sphi 0, %s109
    %s111 = sphi 0, %s109
    %s112 = sphi 0, %s111
    %s126 = sphi 0, %s112
    %s130 = sphi 0, %s130
    %s132 = sphi 0, %s130
    %s133 = sphi 0, %s132
    %s147 = sphi 0, %s133
    %s153 = sphi 0, %s155
    %s156 = sphi 0, %s153
    %s157 = sphi 0, %s156
    %s173 = sphi 0, %s157
  $region4: #{resblock_forward.1} parent=0 // loop_header_branch
    %15 = sbr.rel (%p13) target = $region8
  $region5: #{resblock_forward.1} parent=0 // loop_body
    %s17 = ssub.s32 %s12, 1
    %s18 = ssub.s32 %s12, 2
    %s19 = sadd.s32 %s12, 1
    %s21 = sadd.s32 %s20, 1
    %p24 = scmp.eq.s32.totalorder %s12, 1
    %p25 = scmp.ne.s32.totalorder %s20, %s22
    %p26 = scmp.eq.s32.totalorder %s12, 0
    %p27 = por %p25, %p26
    %p28 = scmp.ne.s32.totalorder %s20, %s22
    %p29 = scmp.eq.s32.totalorder %s17, 1
    %p30 = por %p28, %p29
    %p31 = scmp.ne.s32.totalorder %s22, %s23
    %p32 = scmp.eq.s32.totalorder %s17, 0
    %p33 = por %p31, %p32
    %p34 = scmp.ne.s32.totalorder %s22, %s23
    %p35 = scmp.eq.s32.totalorder %s18, 1
    %p36 = por %p34, %p35
    %p38 = scmp.ne.s32.totalorder %s23, %s37
    %p39 = scmp.eq.s32.totalorder %s18, 0
    %p40 = por %p38, %p39
    %s41 = ssub.s32 %s12, %s19
    %p42 = scmp.eq.s32.totalorder %s41, 0
    %s44 = sadd.s32 %s43, 1
    %s45 = scalar_select %p42, %s43, %s44
    %p48 = pneg %p42
    %p49 = scmp.eq.s32.totalorder %s12, 1
    %p50 = por %p48, %p49
    %p51 = scmp.ne.s32.totalorder %s43, %s46
    %p52 = scmp.eq.s32.totalorder %s12, 0
    %p53 = por %p51, %p52
    %p54 = scmp.ne.s32.totalorder %s43, %s46
    %p55 = scmp.eq.s32.totalorder %s17, 1
    %p56 = por %p54, %p55
    %p57 = scmp.ne.s32.totalorder %s46, %s47
    %p58 = scmp.eq.s32.totalorder %s17, 0
    %p59 = por %p57, %p58
    %p60 = scmp.ne.s32.totalorder %s46, %s47
    %p61 = scmp.eq.s32.totalorder %s18, 1
    %p62 = por %p60, %p61
    %p64 = scmp.ne.s32.totalorder %s47, %s63
    %p65 = scmp.eq.s32.totalorder %s18, 0
    %p66 = por %p64, %p65
    %s68 = sadd.s32 %s67, 1
    %p71 = scmp.eq.s32.totalorder %s12, 1
    %p72 = scmp.ne.s32.totalorder %s67, %s69
    %p73 = scmp.eq.s32.totalorder %s12, 0
    %p74 = por %p72, %p73
    %p75 = scmp.ne.s32.totalorder %s67, %s69
    %p76 = scmp.eq.s32.totalorder %s17, 1
    %p77 = por %p75, %p76
    %p78 = scmp.ne.s32.totalorder %s69, %s70
    %p79 = scmp.eq.s32.totalorder %s17, 0
    %p80 = por %p78, %p79
    %p81 = scmp.ne.s32.totalorder %s69, %s70
    %p82 = scmp.eq.s32.totalorder %s18, 1
    %p83 = por %p81, %p82
    %p85 = scmp.ne.s32.totalorder %s70, %s84
    %p86 = scmp.eq.s32.totalorder %s18, 0
    %p87 = por %p85, %p86
    %s89 = sadd.s32 %s88, 1
    %p92 = scmp.eq.s32.totalorder %s12, 1
    %p93 = scmp.ne.s32.totalorder %s88, %s90
    %p94 = scmp.eq.s32.totalorder %s12, 0
    %p95 = por %p93, %p94
    %p96 = scmp.ne.s32.totalorder %s88, %s90
    %p97 = scmp.eq.s32.totalorder %s17, 1
    %p98 = por %p96, %p97
    %p99 = scmp.ne.s32.totalorder %s90, %s91
    %p100 = scmp.eq.s32.totalorder %s17, 0
    %p101 = por %p99, %p100
    %p102 = scmp.ne.s32.totalorder %s90, %s91
    %p103 = scmp.eq.s32.totalorder %s18, 1
    %p104 = por %p102, %p103
    %p106 = scmp.ne.s32.totalorder %s91, %s105
    %p107 = scmp.eq.s32.totalorder %s18, 0
    %p108 = por %p106, %p107
    %s110 = sadd.s32 %s109, 1
    %p113 = scmp.eq.s32.totalorder %s12, 1
    %p114 = scmp.ne.s32.totalorder %s109, %s111
    %p115 = scmp.eq.s32.totalorder %s12, 0
    %p116 = por %p114, %p115
    %p117 = scmp.ne.s32.totalorder %s109, %s111
    %p118 = scmp.eq.s32.totalorder %s17, 1
    %p119 = por %p117, %p118
    %p120 = scmp.ne.s32.totalorder %s111, %s112
    %p121 = scmp.eq.s32.totalorder %s17, 0
    %p122 = por %p120, %p121
    %p123 = scmp.ne.s32.totalorder %s111, %s112
    %p124 = scmp.eq.s32.totalorder %s18, 1
    %p125 = por %p123, %p124
    %p127 = scmp.ne.s32.totalorder %s112, %s126
    %p128 = scmp.eq.s32.totalorder %s18, 0
    %p129 = por %p127, %p128
    %s131 = sadd.s32 %s130, 1
    %p134 = scmp.eq.s32.totalorder %s12, 1
    %p135 = scmp.ne.s32.totalorder %s130, %s132
    %p136 = scmp.eq.s32.totalorder %s12, 0
    %p137 = por %p135, %p136
    %p138 = scmp.ne.s32.totalorder %s130, %s132
    %p139 = scmp.eq.s32.totalorder %s17, 1
    %p140 = por %p138, %p139
    %p141 = scmp.ne.s32.totalorder %s132, %s133
    %p142 = scmp.eq.s32.totalorder %s17, 0
    %p143 = por %p141, %p142
    %p144 = scmp.ne.s32.totalorder %s132, %s133
    %p145 = scmp.eq.s32.totalorder %s18, 1
    %p146 = por %p144, %p145
    %p148 = scmp.ne.s32.totalorder %s133, %s147
    %p149 = scmp.eq.s32.totalorder %s18, 0
    %p150 = por %p148, %p149
    %s151 = ssub.s32 %s12, %s19
    %p152 = scmp.eq.s32.totalorder %s151, 0
    %s154 = sadd.s32 %s153, 1
    %s155 = scalar_select %p152, %s153, %s154
    %p158 = pneg %p152
    %p159 = scmp.eq.s32.totalorder %s12, 1
    %p160 = por %p158, %p159
    %p161 = scmp.ne.s32.totalorder %s153, %s156
    %p162 = scmp.eq.s32.totalorder %s12, 0
    %p163 = por %p161, %p162
    %p164 = scmp.ne.s32.totalorder %s153, %s156
    %p165 = scmp.eq.s32.totalorder %s17, 1
    %p166 = por %p164, %p165
    %p167 = scmp.ne.s32.totalorder %s156, %s157
    %p168 = scmp.eq.s32.totalorder %s17, 0
    %p169 = por %p167, %p168
    %p170 = scmp.ne.s32.totalorder %s156, %s157
    %p171 = scmp.eq.s32.totalorder %s18, 1
    %p172 = por %p170, %p171
    %p174 = scmp.ne.s32.totalorder %s157, %s173
    %p175 = scmp.eq.s32.totalorder %s18, 0
    %p176 = por %p174, %p175
    %p177 = scmp.le.s32.totalorder 1, %s12
    %p178 = scmp.lt.s32.totalorder %s12, 3
    %p179 = pnand %p177, %p178
    %p180 = pneg %p179
    // Predicated region
    $region9: #{resblock_forward.1} parent=5 // pred_check
      _
    $region10: #{resblock_forward.1} parent=5 // pred_check_branch
      %182 = sbr.rel (%p179) target = $region12
    $region11: #{resblock_forward.1} parent=5 // pred_region
      %s183 = ssub.s32 %s12, 1
      // Predicated region
      $region13: #{resblock_forward.1} parent=11 // pred_check
        %p184 = pneg %p33
      $region14: #{resblock_forward.1} parent=11 // pred_check_branch
        %186 = sbr.rel (%p184) target = $region16
      $region15: #{resblock_forward.1} parent=11 // pred_region
        _
      $region16: #{resblock_forward.1} parent=11 // pred_fallthru
        _
      // Predicated region
      $region17: #{resblock_forward.1} parent=11 // pred_check
        %p187 = pneg %p80
      $region18: #{resblock_forward.1} parent=11 // pred_check_branch
        %189 = sbr.rel (%p187) target = $region20
      $region19: #{resblock_forward.1} parent=11 // pred_region
        _
      $region20: #{resblock_forward.1} parent=11 // pred_fallthru
        _
      // Predicated region
      $region21: #{resblock_forward.1} parent=11 // pred_check
        %p190 = pneg %p101
      $region22: #{resblock_forward.1} parent=11 // pred_check_branch
        %192 = sbr.rel (%p190) target = $region24
      $region23: #{resblock_forward.1} parent=11 // pred_region
        _
      $region24: #{resblock_forward.1} parent=11 // pred_fallthru
        _
      // Predicated region
      $region25: #{resblock_forward.1} parent=11 // pred_check
        %p193 = pneg %p122
      $region26: #{resblock_forward.1} parent=11 // pred_check_branch
        %195 = sbr.rel (%p193) target = $region28
      $region27: #{resblock_forward.1} parent=11 // pred_region
        _
      $region28: #{resblock_forward.1} parent=11 // pred_fallthru
        _
      // Predicated region
      $region29: #{resblock_forward.1} parent=11 // pred_check
        %p196 = pneg %p143
      $region30: #{resblock_forward.1} parent=11 // pred_check_branch
        %198 = sbr.rel (%p196) target = $region32
      $region31: #{resblock_forward.1} parent=11 // pred_region
        _
      $region32: #{resblock_forward.1} parent=11 // pred_fallthru
        _
    $region12: #{resblock_forward.1} parent=5 // pred_fallthru
      _
    %p199 = scmp.lt.s32.totalorder %s12, 2
    // Predicated region
    $region33: #{resblock_forward.1} parent=5 // pred_check
      %p200 = pneg %p199
    $region34: #{resblock_forward.1} parent=5 // pred_check_branch
      %202 = sbr.rel (%p200) target = $region36
    $region35: #{resblock_forward.1} parent=5 // pred_region
      // Predicated region
      $region37: #{resblock_forward.1} parent=35 // pred_check
        %p203 = pneg %p53
      $region38: #{resblock_forward.1} parent=35 // pred_check_branch
        %205 = sbr.rel (%p203) target = $region40
      $region39: #{resblock_forward.1} parent=35 // pred_region
        %p206 = scmp.lt.s32.totalorder %s12, 1
        %s207 = scalar_select %p206, %s12, 1
        %s208 = smul.addr %s207, 8
        %s209 = smul.addr %s208, 8
        %s210 = scalar_lea.vmem %s1, %s209
      $region40: #{resblock_forward.1} parent=35 // pred_fallthru
        _
    $region36: #{resblock_forward.1} parent=5 // pred_fallthru
      _
    %p211 = scmp.le.s32.totalorder 1, %s12
    %p212 = scmp.lt.s32.totalorder %s12, 3
    %p213 = pnand %p211, %p212
    %p214 = pneg %p213
    // Predicated region
    $region41: #{resblock_forward.1} parent=5 // pred_check
      _
    $region42: #{resblock_forward.1} parent=5 // pred_check_branch
      %216 = sbr.rel (%p213) target = $region44
    $region43: #{resblock_forward.1} parent=5 // pred_region
      %s217 = ssub.s32 %s12, 1
      %p218 = pneg %p33
      %p219 = pneg %p30
      %p220 = scmp.lt.s32.totalorder %s17, 1
      %s221 = scalar_select %p220, %s17, 1
      %s222 = smul.addr %s221, 8
      %s223 = smul.addr %s222, 8
      %s224 = scalar_lea.vmem %s1, %s223
      %p225 = pneg %p59
      %p226 = pneg %p56
      %p227 = pneg %p80
      %p228 = pneg %p77
      %p229 = pneg %p101
      %p230 = pneg %p98
      %p231 = pneg %p122
      %p232 = pneg %p119
      %p233 = pneg %p143
      %p234 = pneg %p140
      %p235 = pneg %p169
      %p236 = pneg %p166
      %p237 = scmp.lt.s32.totalorder %s17, 1
      %s238 = scalar_select %p237, %s17, 1
      %s239 = smul.addr %s238, 8
      %s240 = smul.addr %s239, 8
      %s241 = scalar_lea.vmem %s6, %s240
      %p242 = scmp.lt.s32.totalorder %s17, 1
      %s243 = scalar_select %p242, %s17, 1
      %s244 = smul.addr %s243, 8
      %s245 = smul.addr %s244, 8
      %s246 = scalar_lea.vmem %s1, %s245
      %p247 = scmp.lt.s32.totalorder %s17, 1
      %s248 = scalar_select %p247, %s17, 1
      %s249 = smul.addr %s248, 8
      %s250 = smul.addr %s249, 8
      %s251 = scalar_lea.vmem %s6, %s250
      %v255 = vld [vmem:[%s246] sm:$0xff]
      %v256 = vld [vmem:[%s246 + $0x8] sm:$0xff]
      %v257 = vld [vmem:[%s246 + $0x10] sm:$0xff]
      %v258 = vld [vmem:[%s246 + $0x18] sm:$0xff]
      %v259 = vld [vmem:[%s246 + $0x20] sm:$0xff]
      %v260 = vld [vmem:[%s246 + $0x28] sm:$0xff]
      %v261 = vld [vmem:[%s246 + $0x30] sm:$0xff]
      %v262 = vld [vmem:[%s246 + $0x38] sm:$0xff]
      %v263 = vld [vmem:[%s2] sm:$0xff]
      %v264 = vld [vmem:[%s2 + $0x8] sm:$0xf]
      %v265 = vld [vmem:[%s2 + $0xc] sm:$0xff]
      %v266 = vld [vmem:[%s2 + $0x14] sm:$0xf]
      %v267 = vld [vmem:[%s2 + $0x18] sm:$0xff]
      %v268 = vld [vmem:[%s2 + $0x20] sm:$0xf]
      %v269 = vld [vmem:[%s2 + $0x24] sm:$0xff]
      %v270 = vld [vmem:[%s2 + $0x2c] sm:$0xf]
      %v271 = vld [vmem:[%s4] sm:$0xff]
      %v272 = vld [vmem:[%s4 + $0x8] sm:$0xf]
      %v273 = vld [vmem:[%s4 + $0xc] sm:$0xff]
      %v274 = vld [vmem:[%s4 + $0x14] sm:$0xf]
      %v275 = vld [vmem:[%s4 + $0x18] sm:$0xff]
      %v276 = vld [vmem:[%s4 + $0x20] sm:$0xf]
      %v277 = vld [vmem:[%s4 + $0x24] sm:$0xff]
      %v278 = vld [vmem:[%s4 + $0x2c] sm:$0xf]
      %v279 = vld [vmem:[%s3] sm:$0xff]
      %v280 = vld [vmem:[%s3 + $0x8] sm:$0xff]
      %v281 = vld [vmem:[%s3 + $0x10] sm:$0xff]
      %v282 = vld [vmem:[%s3 + $0x18] sm:$0xff]
      %v283 = vld [vmem:[%s5] sm:$0xff]
      %v284 = vld [vmem:[%s5 + $0x8] sm:$0xff]
      %v285 = vld [vmem:[%s5 + $0x10] sm:$0xff]
      %v286 = vld [vmem:[%s5 + $0x18] sm:$0xff]
      %287 = vst [vmem:[#allocation2] sm:$0xff] 0
      %288 = vst [vmem:[#allocation2 + $0x20] sm:$0xff] 0
      %289 = vst [vmem:[#allocation2 + $0x18] sm:$0xff] 0
      %290 = vst [vmem:[#allocation2 + $0x38] sm:$0xff] 0
      %v291 = vpack.c.bf16 %v257, %v255
      %v292 = vpack.c.bf16 %v258, %v256
      %v293 = vpack.c.bf16 %v261, %v259
      %v294 = vpack.c.bf16 %v262, %v260
      %295 = vst [vmem:[#allocation2 + $0x8] sm:$0xff] %v291
      %296 = vst [vmem:[#allocation2 + $0x10] sm:$0xff] %v292
      %297 = vst [vmem:[#allocation2 + $0x28] sm:$0xff] %v293
      %298 = vst [vmem:[#allocation2 + $0x30] sm:$0xff] %v294
      %v299 = vld [vmem:[#allocation2] sm:$0xff]
      %v300 = vld [vmem:[#allocation2 + $0x8] sm:$0xff]
      %v301 = vld [vmem:[#allocation2 + $0x10] sm:$0xff]
      %v302 = vld [vmem:[#allocation2 + $0x20] sm:$0xff]
      %v303 = vld [vmem:[#allocation2 + $0x28] sm:$0xff]
      %v304 = vld [vmem:[#allocation2 + $0x30] sm:$0xff]
      %v305 = vld [vmem:[%s0] ss:$8 sm:$0x3]
      %vm306 = vcmp.ne.f32.partialorder %v305, 0.0
      %v307 = vsel %vm306, 1, 0
      %v308 = vlaneseq
      %v309 = vshrl.u32 %v308, 7
      %v310 = vsub.s32 0, %v309
      %v311 = vrot.slane %v307, %v310
      %v312 = vlaneseq
      %v313 = vshrl.u32 %v312, 7
      %v314 = vsub.s32 1, %v313
      %v315 = vrot.slane %v307, %v314
      %vm316 = vcmp.eq.s32.totalorder %v311, 1
      %vm317 = vcmp.eq.s32.totalorder %v315, 1
      %vm318 = vmpackc.low %vm317, %vm316
      %v319 = vsel %vm318, 65537, 0
      %v320 = vlaneseq
      %v321 = vshrl.u32 %v320, 7
      %v322 = vsub.s32 0, %v321
      %v323 = vrot.slane %v319, %v322
      %v324 = vlaneseq
      %v325 = vshrl.u32 %v324, 7
      %v326 = vsub.s32 4, %v325
      %v327 = vrot.slane %v319, %v326
      %328 = vrot.lane.b32.xlu0 %v323, 111
      %v329 = vpop.permute.xlu0 %328
      %330 = vrot.lane.b32.xlu0 %v327, 111
      %v331 = vpop.permute.xlu0 %330
      %vm332 = vcmask 908288
      %v333 = vsel %vm332, %v329, %v331
      %vm334 = vcmp.ne.s16.totalorder %v329, 0
      %vm335 = vcmp.ne.s16.totalorder %v333, 0
      %vm336 = vcmp.ne.s16.totalorder %v331, 0
      %v337 = vsel %vm334, %v299, 0
      %v338 = vsel %vm335, %v300, 0
      %v339 = vsel %vm336, %v301, 0
      %v340 = vsel %vm334, %v302, 0
      %v341 = vsel %vm335, %v303, 0
      %v342 = vsel %vm336, %v304, 0
      %s343 = scalar_lea.vmem %s0, 1
      %v344 = vld [vmem:[%s343] ss:$8 sm:$0x3]
      %vm345 = vcmp.ne.f32.partialorder %v344, 0.0
      %v346 = vsel %vm345, 1, 0
      %v347 = vlaneseq
      %v348 = vshrl.u32 %v347, 7
      %v349 = vsub.s32 0, %v348
      %v350 = vrot.slane %v346, %v349
      %v351 = vlaneseq
      %v352 = vshrl.u32 %v351, 7
      %v353 = vsub.s32 1, %v352
      %v354 = vrot.slane %v346, %v353
      %vm355 = vcmp.eq.s32.totalorder %v350, 1
      %vm356 = vcmp.eq.s32.totalorder %v354, 1
      %vm357 = vmpackc.low %vm356, %vm355
      %v358 = vsel %vm357, 65537, 0
      %v359 = vlaneseq
      %v360 = vshrl.u32 %v359, 7
      %v361 = vsub.s32 0, %v360
      %v362 = vrot.slane %v358, %v361
      %v363 = vlaneseq
      %v364 = vshrl.u32 %v363, 7
      %v365 = vsub.s32 4, %v364
      %v366 = vrot.slane %v358, %v365
      %367 = vrot.lane.b32.xlu0 %v362, 112
      %v368 = vpop.permute.xlu0 %367
      %369 = vrot.lane.b32.xlu0 %v366, 112
      %v370 = vpop.permute.xlu0 %369
      %vm371 = vcmask 916480
      %v372 = vsel %vm371, %v368, %v370
      %vm373 = vcmp.ne.s16.totalorder %v368, 0
      %vm374 = vcmp.ne.s16.totalorder %v372, 0
      %vm375 = vcmp.ne.s16.totalorder %v370, 0
      %v376 = vsel %vm373, %v299, 0
      %v377 = vsel %vm374, %v300, 0
      %v378 = vsel %vm375, %v301, 0
      %v379 = vsel %vm373, %v302, 0
      %v380 = vsel %vm374, %v303, 0
      %v381 = vsel %vm375, %v304, 0
      %s382 = scalar_lea.vmem %s0, 2
      %v383 = vld [vmem:[%s382] ss:$8 sm:$0x3]
      %vm384 = vcmp.ne.f32.partialorder %v383, 0.0
      %v385 = vsel %vm384, 1, 0
      %v386 = vlaneseq
      %v387 = vshrl.u32 %v386, 7
      %v388 = vsub.s32 0, %v387
      %v389 = vrot.slane %v385, %v388
      %v390 = vlaneseq
      %v391 = vshrl.u32 %v390, 7
      %v392 = vsub.s32 1, %v391
      %v393 = vrot.slane %v385, %v392
      %vm394 = vcmp.eq.s32.totalorder %v389, 1
      %vm395 = vcmp.eq.s32.totalorder %v393, 1
      %vm396 = vmpackc.low %vm395, %vm394
      %v397 = vsel %vm396, 65537, 0
      %v398 = vlaneseq
      %v399 = vshrl.u32 %v398, 7
      %v400 = vsub.s32 0, %v399
      %v401 = vrot.slane %v397, %v400
      %v402 = vlaneseq
      %v403 = vshrl.u32 %v402, 7
      %v404 = vsub.s32 4, %v403
      %v405 = vrot.slane %v397, %v404
      %406 = vrot.lane.b32.xlu0 %v401, 113
      %v407 = vpop.permute.xlu0 %406
      %408 = vrot.lane.b32.xlu0 %v405, 113
      %v409 = vpop.permute.xlu0 %408
      %vm410 = vcmask 924672
      %v411 = vsel %vm410, %v407, %v409
      %vm412 = vcmp.ne.s16.totalorder %v407, 0
      %vm413 = vcmp.ne.s16.totalorder %v411, 0
      %vm414 = vcmp.ne.s16.totalorder %v409, 0
      %v415 = vsel %vm412, %v299, 0
      %v416 = vsel %vm413, %v300, 0
      %v417 = vsel %vm414, %v301, 0
      %v418 = vsel %vm412, %v302, 0
      %v419 = vsel %vm413, %v303, 0
      %v420 = vsel %vm414, %v304, 0
      %s421 = scalar_lea.vmem %s0, 3
      %v422 = vld [vmem:[%s421] ss:$8 sm:$0x3]
      %vm423 = vcmp.ne.f32.partialorder %v422, 0.0
      %v424 = vsel %vm423, 1, 0
      %v425 = vlaneseq
      %v426 = vshrl.u32 %v425, 7
      %v427 = vsub.s32 0, %v426
      %v428 = vrot.slane %v424, %v427
      %v429 = vlaneseq
      %v430 = vshrl.u32 %v429, 7
      %v431 = vsub.s32 1, %v430
      %v432 = vrot.slane %v424, %v431
      %vm433 = vcmp.eq.s32.totalorder %v428, 1
      %vm434 = vcmp.eq.s32.totalorder %v432, 1
      %vm435 = vmpackc.low %vm434, %vm433
      %v436 = vsel %vm435, 65537, 0
      %v437 = vlaneseq
      %v438 = vshrl.u32 %v437, 7
      %v439 = vsub.s32 0, %v438
      %v440 = vrot.slane %v436, %v439
      %v441 = vlaneseq
      %v442 = vshrl.u32 %v441, 7
      %v443 = vsub.s32 4, %v442
      %v444 = vrot.slane %v436, %v443
      %445 = vrot.lane.b32.xlu0 %v440, 127
      %v446 = vpop.permute.xlu0 %445
      %447 = vrot.lane.b32.xlu0 %v444, 127
      %v448 = vpop.permute.xlu0 %447
      %vm449 = vcmask 1039360
      %v450 = vsel %vm449, %v446, %v448
      %vm451 = vcmp.ne.s16.totalorder %v446, 0
      %vm452 = vcmp.ne.s16.totalorder %v450, 0
      %vm453 = vcmp.ne.s16.totalorder %v448, 0
      %v454 = vsel %vm451, %v299, 0
      %v455 = vsel %vm452, %v300, 0
      %v456 = vsel %vm453, %v301, 0
      %v457 = vsel %vm451, %v302, 0
      %v458 = vsel %vm452, %v303, 0
      %v459 = vsel %vm453, %v304, 0
      %v460 = vld [vmem:[#allocation2 + $0x8] sm:$0xff]
      %v461 = vld [vmem:[#allocation2 + $0x10] sm:$0xff]
      %v462 = vld [vmem:[#allocation2 + $0x18] sm:$0xff]
      %v463 = vld [vmem:[#allocation2 + $0x28] sm:$0xff]
      %v464 = vld [vmem:[#allocation2 + $0x30] sm:$0xff]
      %v465 = vld [vmem:[#allocation2 + $0x38] sm:$0xff]
      %s466 = scalar_lea.vmem %s0, 5
      %v467 = vld [vmem:[%s466] ss:$8 sm:$0x3]
      %vm468 = vcmp.ne.f32.partialorder %v467, 0.0
      %v469 = vsel %vm468, 1, 0
      %v470 = vlaneseq
      %v471 = vshrl.u32 %v470, 7
      %v472 = vsub.s32 0, %v471
      %v473 = vrot.slane %v469, %v472
      %v474 = vlaneseq
      %v475 = vshrl.u32 %v474, 7
      %v476 = vsub.s32 1, %v475
      %v477 = vrot.slane %v469, %v476
      %vm478 = vcmp.eq.s32.totalorder %v473, 1
      %vm479 = vcmp.eq.s32.totalorder %v477, 1
      %vm480 = vmpackc.low %vm479, %vm478
      %v481 = vsel %vm480, 65537, 0
      %v482 = vlaneseq
      %v483 = vshrl.u32 %v482, 7
      %v484 = vsub.s32 0, %v483
      %v485 = vrot.slane %v481, %v484
      %v486 = vlaneseq
      %v487 = vshrl.u32 %v486, 7
      %v488 = vsub.s32 4, %v487
      %v489 = vrot.slane %v481, %v488
      %490 = vrot.lane.b32.xlu0 %v485, 1
      %v491 = vpop.permute.xlu0 %490
      %492 = vrot.lane.b32.xlu0 %v489, 1
      %v493 = vpop.permute.xlu0 %492
      %vm494 = vcmask 7168
      %v495 = vsel %vm494, %v491, %v493
      %vm496 = vcmp.ne.s16.totalorder %v491, 0
      %vm497 = vcmp.ne.s16.totalorder %v495, 0
      %vm498 = vcmp.ne.s16.totalorder %v493, 0
      %v499 = vsel %vm496, %v460, 0
      %v500 = vsel %vm497, %v461, 0
      %v501 = vsel %vm498, %v462, 0
      %v502 = vsel %vm496, %v463, 0
      %v503 = vsel %vm497, %v464, 0
      %v504 = vsel %vm498, %v465, 0
      %s505 = scalar_lea.vmem %s0, 6
      %v506 = vld [vmem:[%s505] ss:$8 sm:$0x3]
      %vm507 = vcmp.ne.f32.partialorder %v506, 0.0
      %v508 = vsel %vm507, 1, 0
      %v509 = vlaneseq
      %v510 = vshrl.u32 %v509, 7
      %v511 = vsub.s32 0, %v510
      %v512 = vrot.slane %v508, %v511
      %v513 = vlaneseq
      %v514 = vshrl.u32 %v513, 7
      %v515 = vsub.s32 1, %v514
      %v516 = vrot.slane %v508, %v515
      %vm517 = vcmp.eq.s32.totalorder %v512, 1
      %vm518 = vcmp.eq.s32.totalorder %v516, 1
      %vm519 = vmpackc.low %vm518, %vm517
      %v520 = vsel %vm519, 65537, 0
      %v521 = vlaneseq
      %v522 = vshrl.u32 %v521, 7
      %v523 = vsub.s32 0, %v522
      %v524 = vrot.slane %v520, %v523
      %v525 = vlaneseq
      %v526 = vshrl.u32 %v525, 7
      %v527 = vsub.s32 4, %v526
      %v528 = vrot.slane %v520, %v527
      %529 = vrot.lane.b32.xlu0 %v524, 15
      %v530 = vpop.permute.xlu0 %529
      %531 = vrot.lane.b32.xlu0 %v528, 15
      %v532 = vpop.permute.xlu0 %531
      %vm533 = vcmask 121856
      %v534 = vsel %vm533, %v530, %v532
      %vm535 = vcmp.ne.s16.totalorder %v530, 0
      %vm536 = vcmp.ne.s16.totalorder %v534, 0
      %vm537 = vcmp.ne.s16.totalorder %v532, 0
      %v538 = vsel %vm535, %v460, 0
      %v539 = vsel %vm536, %v461, 0
      %v540 = vsel %vm537, %v462, 0
      %v541 = vsel %vm535, %v463, 0
      %v542 = vsel %vm536, %v464, 0
      %v543 = vsel %vm537, %v465, 0
      %s544 = scalar_lea.vmem %s0, 7
      %v545 = vld [vmem:[%s544] ss:$8 sm:$0x3]
      %vm546 = vcmp.ne.f32.partialorder %v545, 0.0
      %v547 = vsel %vm546, 1, 0
      %v548 = vlaneseq
      %v549 = vshrl.u32 %v548, 7
      %v550 = vsub.s32 0, %v549
      %v551 = vrot.slane %v547, %v550
      %v552 = vlaneseq
      %v553 = vshrl.u32 %v552, 7
      %v554 = vsub.s32 1, %v553
      %v555 = vrot.slane %v547, %v554
      %vm556 = vcmp.eq.s32.totalorder %v551, 1
      %vm557 = vcmp.eq.s32.totalorder %v555, 1
      %vm558 = vmpackc.low %vm557, %vm556
      %v559 = vsel %vm558, 65537, 0
      %v560 = vlaneseq
      %v561 = vshrl.u32 %v560, 7
      %v562 = vsub.s32 0, %v561
      %v563 = vrot.slane %v559, %v562
      %v564 = vlaneseq
      %v565 = vshrl.u32 %v564, 7
      %v566 = vsub.s32 4, %v565
      %v567 = vrot.slane %v559, %v566
      %568 = vrot.lane.b32.xlu0 %v563, 16
      %v569 = vpop.permute.xlu0 %568
      %570 = vrot.lane.b32.xlu0 %v567, 16
      %v571 = vpop.permute.xlu0 %570
      %vm572 = vcmask 130048
      %v573 = vsel %vm572, %v569, %v571
      %vm574 = vcmp.ne.s16.totalorder %v569, 0
      %vm575 = vcmp.ne.s16.totalorder %v573, 0
      %vm576 = vcmp.ne.s16.totalorder %v571, 0
      %v577 = vsel %vm574, %v460, 0
      %v578 = vsel %vm575, %v461, 0
      %v579 = vsel %vm576, %v462, 0
      %v580 = vsel %vm574, %v463, 0
      %v581 = vsel %vm575, %v464, 0
      %v582 = vsel %vm576, %v465, 0
      %s583 = scalar_lea.vmem %s0, 16
      %v584 = vld [vmem:[%s583] ss:$8 sm:$0x3]
      %vm585 = vcmp.ne.f32.partialorder %v584, 0.0
      %v586 = vsel %vm585, 1, 0
      %v587 = vlaneseq
      %v588 = vshrl.u32 %v587, 7
      %v589 = vsub.s32 0, %v588
      %v590 = vrot.slane %v586, %v589
      %v591 = vlaneseq
      %v592 = vshrl.u32 %v591, 7
      %v593 = vsub.s32 1, %v592
      %v594 = vrot.slane %v586, %v593
      %vm595 = vcmp.eq.s32.totalorder %v590, 1
      %vm596 = vcmp.eq.s32.totalorder %v594, 1
      %vm597 = vmpackc.low %vm596, %vm595
      %v598 = vsel %vm597, 65537, 0
      %v599 = vlaneseq
      %v600 = vshrl.u32 %v599, 7
      %v601 = vsub.s32 0, %v600
      %v602 = vrot.slane %v598, %v601
      %v603 = vlaneseq
      %v604 = vshrl.u32 %v603, 7
      %v605 = vsub.s32 4, %v604
      %v606 = vrot.slane %v598, %v605
      %607 = vrot.lane.b32.xlu0 %v602, 17
      %v608 = vpop.permute.xlu0 %607
      %609 = vrot.lane.b32.xlu0 %v606, 17
      %v610 = vpop.permute.xlu0 %609
      %vm611 = vcmask 138240
      %v612 = vsel %vm611, %v608, %v610
      %vm613 = vcmp.ne.s16.totalorder %v608, 0
      %vm614 = vcmp.ne.s16.totalorder %v612, 0
      %vm615 = vcmp.ne.s16.totalorder %v610, 0
      %v616 = vsel %vm613, %v460, 0
      %v617 = vsel %vm614, %v461, 0
      %v618 = vsel %vm615, %v462, 0
      %v619 = vsel %vm613, %v463, 0
      %v620 = vsel %vm614, %v464, 0
      %v621 = vsel %vm615, %v465, 0
      %628 = vrot.lane.b32.xlu0 %v376, 127
      %v629 = vpop.permute.xlu0 %628
      %630 = vrot.lane.b32.xlu0 %v377, 127
      %v631 = vpop.permute.xlu0 %630
      %632 = vrot.lane.b32.xlu0 %v378, 127
      %v633 = vpop.permute.xlu0 %632
      %634 = vrot.lane.b32.xlu0 %v379, 127
      %v635 = vpop.permute.xlu0 %634
      %636 = vrot.lane.b32.xlu0 %v380, 127
      %v637 = vpop.permute.xlu0 %636
      %638 = vrot.lane.b32.xlu0 %v381, 127
      %v639 = vpop.permute.xlu0 %638
      %v640 = vsel %vm449, %v629, %v631
      %v641 = vsel %vm449, %v631, %v633
      %v642 = vsel %vm449, %v635, %v637
      %v643 = vsel %vm449, %v637, %v639
      %650 = vrot.lane.b32.xlu0 %v415, 126
      %v651 = vpop.permute.xlu0 %650
      %652 = vrot.lane.b32.xlu0 %v416, 126
      %v653 = vpop.permute.xlu0 %652
      %654 = vrot.lane.b32.xlu0 %v417, 126
      %v655 = vpop.permute.xlu0 %654
      %656 = vrot.lane.b32.xlu0 %v418, 126
      %v657 = vpop.permute.xlu0 %656
      %658 = vrot.lane.b32.xlu0 %v419, 126
      %v659 = vpop.permute.xlu0 %658
      %660 = vrot.lane.b32.xlu0 %v420, 126
      %v661 = vpop.permute.xlu0 %660
      %vm662 = vcmask 1031168
      %v663 = vsel %vm662, %v651, %v653
      %v664 = vsel %vm662, %v653, %v655
      %v665 = vsel %vm662, %v657, %v659
      %v666 = vsel %vm662, %v659, %v661
      %673 = vrot.lane.b32.xlu0 %v454, 112
      %v674 = vpop.permute.xlu0 %673
      %675 = vrot.lane.b32.xlu0 %v455, 112
      %v676 = vpop.permute.xlu0 %675
      %677 = vrot.lane.b32.xlu0 %v456, 112
      %v678 = vpop.permute.xlu0 %677
      %679 = vrot.lane.b32.xlu0 %v457, 112
      %v680 = vpop.permute.xlu0 %679
      %681 = vrot.lane.b32.xlu0 %v458, 112
      %v682 = vpop.permute.xlu0 %681
      %683 = vrot.lane.b32.xlu0 %v459, 112
      %v684 = vpop.permute.xlu0 %683
      %v685 = vsel %vm371, %v674, %v676
      %v686 = vsel %vm371, %v676, %v678
      %v687 = vsel %vm371, %v680, %v682
      %v688 = vsel %vm371, %v682, %v684
      %693 = vrot.lane.b32.xlu0 %v300, 111
      %v694 = vpop.permute.xlu0 %693
      %695 = vrot.lane.b32.xlu0 %v301, 111
      %v696 = vpop.permute.xlu0 %695
      %697 = vrot.lane.b32.xlu0 %v303, 111
      %v698 = vpop.permute.xlu0 %697
      %699 = vrot.lane.b32.xlu0 %v304, 111
      %v700 = vpop.permute.xlu0 %699
      %v701 = vsel %vm332, %v694, %v696
      %v702 = vsel %vm332, %v698, %v700
      %709 = vrot.lane.b32.xlu0 %v499, 110
      %v710 = vpop.permute.xlu0 %709
      %711 = vrot.lane.b32.xlu0 %v500, 110
      %v712 = vpop.permute.xlu0 %711
      %713 = vrot.lane.b32.xlu0 %v501, 110
      %v714 = vpop.permute.xlu0 %713
      %715 = vrot.lane.b32.xlu0 %v502, 110
      %v716 = vpop.permute.xlu0 %715
      %717 = vrot.lane.b32.xlu0 %v503, 110
      %v718 = vpop.permute.xlu0 %717
      %719 = vrot.lane.b32.xlu0 %v504, 110
      %v720 = vpop.permute.xlu0 %719
      %vm721 = vcmask 900096
      %v722 = vsel %vm721, %v710, %v712
      %v723 = vsel %vm721, %v712, %v714
      %v724 = vsel %vm721, %v716, %v718
      %v725 = vsel %vm721, %v718, %v720
      %732 = vrot.lane.b32.xlu0 %v538, 96
      %v733 = vpop.permute.xlu0 %732
      %734 = vrot.lane.b32.xlu0 %v539, 96
      %v735 = vpop.permute.xlu0 %734
      %736 = vrot.lane.b32.xlu0 %v540, 96
      %v737 = vpop.permute.xlu0 %736
      %738 = vrot.lane.b32.xlu0 %v541, 96
      %v739 = vpop.permute.xlu0 %738
      %740 = vrot.lane.b32.xlu0 %v542, 96
      %v741 = vpop.permute.xlu0 %740
      %742 = vrot.lane.b32.xlu0 %v543, 96
      %v743 = vpop.permute.xlu0 %742
      %vm744 = vcmask 785408
      %v745 = vsel %vm744, %v733, %v735
      %v746 = vsel %vm744, %v735, %v737
      %v747 = vsel %vm744, %v739, %v741
      %v748 = vsel %vm744, %v741, %v743
      %755 = vrot.lane.b32.xlu0 %v577, 95
      %v756 = vpop.permute.xlu0 %755
      %757 = vrot.lane.b32.xlu0 %v578, 95
      %v758 = vpop.permute.xlu0 %757
      %759 = vrot.lane.b32.xlu0 %v579, 95
      %v760 = vpop.permute.xlu0 %759
      %761 = vrot.lane.b32.xlu0 %v580, 95
      %v762 = vpop.permute.xlu0 %761
      %763 = vrot.lane.b32.xlu0 %v581, 95
      %v764 = vpop.permute.xlu0 %763
      %765 = vrot.lane.b32.xlu0 %v582, 95
      %v766 = vpop.permute.xlu0 %765
      %vm767 = vcmask 777216
      %v768 = vsel %vm767, %v756, %v758
      %v769 = vsel %vm767, %v758, %v760
      %v770 = vsel %vm767, %v762, %v764
      %v771 = vsel %vm767, %v764, %v766
      %778 = vrot.lane.b32.xlu0 %v616, 94
      %v779 = vpop.permute.xlu0 %778
      %780 = vrot.lane.b32.xlu0 %v617, 94
      %v781 = vpop.permute.xlu0 %780
      %782 = vrot.lane.b32.xlu0 %v618, 94
      %v783 = vpop.permute.xlu0 %782
      %784 = vrot.lane.b32.xlu0 %v619, 94
      %v785 = vpop.permute.xlu0 %784
      %786 = vrot.lane.b32.xlu0 %v620, 94
      %v787 = vpop.permute.xlu0 %786
      %788 = vrot.lane.b32.xlu0 %v621, 94
      %v789 = vpop.permute.xlu0 %788
      %vm790 = vcmask 769024
      %v791 = vsel %vm790, %v779, %v781
      %v792 = vsel %vm790, %v781, %v783
      %v793 = vsel %vm790, %v785, %v787
      %v794 = vsel %vm790, %v787, %v789
      %796 = vset.pattern.permute.xlu0 0
      %797 = vperm.xlu0 %796, %v279
      %v798 = vpop.permute.xlu0 %797
      %801 = vset.pattern.permute.xlu0 0
      %802 = vperm.xlu0 %801, %v280
      %v803 = vpop.permute.xlu0 %802
      %806 = vset.pattern.permute.xlu0 0
      %807 = vperm.xlu0 %806, %v281
      %v808 = vpop.permute.xlu0 %807
      %811 = vset.pattern.permute.xlu0 0
      %812 = vperm.xlu0 %811, %v282
      %v813 = vpop.permute.xlu0 %812
      %v823 = vunpack.c.l.b16 %v263
      %v824 = vunpack.c.h.b16 %v263
      %v825 = vunpack.c.l.b16 %v264
      %v826 = vunpack.c.l.b16 %v265
      %v827 = vunpack.c.h.b16 %v265
      %v828 = vunpack.c.l.b16 %v266
      %v829 = vunpack.c.l.b16 %v267
      %v830 = vunpack.c.h.b16 %v267
      %v831 = vunpack.c.l.b16 %v268
      %v832 = vunpack.c.l.b16 %v269
      %v833 = vunpack.c.h.b16 %v269
      %v834 = vunpack.c.l.b16 %v270
      %v835 = vpack.c.b16 %v826, %v823
      %v836 = vpack.c.b16 %v827, %v824
      %v837 = vpack.c.b16 %v828, %v825
      %v838 = vpack.c.b16 %v832, %v829
      %v839 = vpack.c.b16 %v833, %v830
      %v840 = vpack.c.b16 %v834, %v831
      %851 = vrot.lane.b32.xlu0 %v337, 17
      %v852 = vpop.permute.xlu0 %851
      %853 = vrot.lane.b32.xlu0 %v338, 17
      %v854 = vpop.permute.xlu0 %853
      %855 = vrot.lane.b32.xlu0 %v339, 17
      %v856 = vpop.permute.xlu0 %855
      %857 = vrot.lane.b32.xlu0 %v340, 17
      %v858 = vpop.permute.xlu0 %857
      %859 = vrot.lane.b32.xlu0 %v341, 17
      %v860 = vpop.permute.xlu0 %859
      %861 = vrot.lane.b32.xlu0 %v342, 17
      %v862 = vpop.permute.xlu0 %861
      %863 = vrot.lane.b32.xlu0 %v640, 17
      %v864 = vpop.permute.xlu0 %863
      %865 = vrot.lane.b32.xlu0 %v641, 17
      %v866 = vpop.permute.xlu0 %865
      %867 = vrot.lane.b32.xlu0 %v633, 17
      %v868 = vpop.permute.xlu0 %867
      %869 = vrot.lane.b32.xlu0 %v642, 17
      %v870 = vpop.permute.xlu0 %869
      %871 = vrot.lane.b32.xlu0 %v643, 17
      %v872 = vpop.permute.xlu0 %871
      %873 = vrot.lane.b32.xlu0 %v639, 17
      %v874 = vpop.permute.xlu0 %873
      %875 = vrot.lane.b32.xlu0 %v663, 17
      %v876 = vpop.permute.xlu0 %875
      %877 = vrot.lane.b32.xlu0 %v664, 17
      %v878 = vpop.permute.xlu0 %877
      %879 = vrot.lane.b32.xlu0 %v655, 17
      %v880 = vpop.permute.xlu0 %879
      %881 = vrot.lane.b32.xlu0 %v665, 17
      %v882 = vpop.permute.xlu0 %881
      %883 = vrot.lane.b32.xlu0 %v666, 17
      %v884 = vpop.permute.xlu0 %883
      %885 = vrot.lane.b32.xlu0 %v661, 17
      %v886 = vpop.permute.xlu0 %885
      %887 = vrot.lane.b32.xlu0 %v685, 17
      %v888 = vpop.permute.xlu0 %887
      %889 = vrot.lane.b32.xlu0 %v686, 17
      %v890 = vpop.permute.xlu0 %889
      %891 = vrot.lane.b32.xlu0 %v678, 17
      %v892 = vpop.permute.xlu0 %891
      %893 = vrot.lane.b32.xlu0 %v687, 17
      %v894 = vpop.permute.xlu0 %893
      %895 = vrot.lane.b32.xlu0 %v688, 17
      %v896 = vpop.permute.xlu0 %895
      %897 = vrot.lane.b32.xlu0 %v684, 17
      %v898 = vpop.permute.xlu0 %897
      %899 = vrot.lane.b32.xlu0 %v694, 17
      %v900 = vpop.permute.xlu0 %899
      %901 = vrot.lane.b32.xlu0 %v701, 17
      %v902 = vpop.permute.xlu0 %901
      %903 = vrot.lane.b32.xlu0 %v696, 17
      %v904 = vpop.permute.xlu0 %903
      %905 = vrot.lane.b32.xlu0 %v698, 17
      %v906 = vpop.permute.xlu0 %905
      %907 = vrot.lane.b32.xlu0 %v702, 17
      %v908 = vpop.permute.xlu0 %907
      %909 = vrot.lane.b32.xlu0 %v700, 17
      %v910 = vpop.permute.xlu0 %909
      %911 = vrot.lane.b32.xlu0 %v710, 17
      %v912 = vpop.permute.xlu0 %911
      %913 = vrot.lane.b32.xlu0 %v722, 17
      %v914 = vpop.permute.xlu0 %913
      %915 = vrot.lane.b32.xlu0 %v723, 17
      %v916 = vpop.permute.xlu0 %915
      %917 = vrot.lane.b32.xlu0 %v716, 17
      %v918 = vpop.permute.xlu0 %917
      %919 = vrot.lane.b32.xlu0 %v724, 17
      %v920 = vpop.permute.xlu0 %919
      %921 = vrot.lane.b32.xlu0 %v725, 17
      %v922 = vpop.permute.xlu0 %921
      %923 = vrot.lane.b32.xlu0 %v733, 17
      %v924 = vpop.permute.xlu0 %923
      %925 = vrot.lane.b32.xlu0 %v745, 17
      %v926 = vpop.permute.xlu0 %925
      %927 = vrot.lane.b32.xlu0 %v746, 17
      %v928 = vpop.permute.xlu0 %927
      %929 = vrot.lane.b32.xlu0 %v739, 17
      %v930 = vpop.permute.xlu0 %929
      %931 = vrot.lane.b32.xlu0 %v747, 17
      %v932 = vpop.permute.xlu0 %931
      %933 = vrot.lane.b32.xlu0 %v748, 17
      %v934 = vpop.permute.xlu0 %933
      %935 = vrot.lane.b32.xlu0 %v756, 17
      %v936 = vpop.permute.xlu0 %935
      %937 = vrot.lane.b32.xlu0 %v768, 17
      %v938 = vpop.permute.xlu0 %937
      %939 = vrot.lane.b32.xlu0 %v769, 17
      %v940 = vpop.permute.xlu0 %939
      %941 = vrot.lane.b32.xlu0 %v762, 17
      %v942 = vpop.permute.xlu0 %941
      %943 = vrot.lane.b32.xlu0 %v770, 17
      %v944 = vpop.permute.xlu0 %943
      %945 = vrot.lane.b32.xlu0 %v771, 17
      %v946 = vpop.permute.xlu0 %945
      %947 = vrot.lane.b32.xlu0 %v779, 17
      %v948 = vpop.permute.xlu0 %947
      %949 = vrot.lane.b32.xlu0 %v791, 17
      %v950 = vpop.permute.xlu0 %949
      %951 = vrot.lane.b32.xlu0 %v792, 17
      %v952 = vpop.permute.xlu0 %951
      %953 = vrot.lane.b32.xlu0 %v785, 17
      %v954 = vpop.permute.xlu0 %953
      %955 = vrot.lane.b32.xlu0 %v793, 17
      %v956 = vpop.permute.xlu0 %955
      %957 = vrot.lane.b32.xlu0 %v794, 17
      %v958 = vpop.permute.xlu0 %957
      %v959 = vsel %vm611, %v852, %v854
      %v960 = vsel %vm611, %v854, %v856
      %v961 = vsel %vm611, %v858, %v860
      %v962 = vsel %vm611, %v860, %v862
      %v963 = vsel %vm611, %v864, %v866
      %v964 = vsel %vm611, %v866, %v868
      %v965 = vsel %vm611, %v870, %v872
      %v966 = vsel %vm611, %v872, %v874
      %v967 = vsel %vm611, %v876, %v878
      %v968 = vsel %vm611, %v878, %v880
      %v969 = vsel %vm611, %v882, %v884
      %v970 = vsel %vm611, %v884, %v886
      %v971 = vsel %vm611, %v888, %v890
      %v972 = vsel %vm611, %v890, %v892
      %v973 = vsel %vm611, %v894, %v896
      %v974 = vsel %vm611, %v896, %v898
      %v975 = vsel %vm611, %v900, %v902
      %v976 = vsel %vm611, %v902, %v904
      %v977 = vsel %vm611, %v906, %v908
      %v978 = vsel %vm611, %v908, %v910
      %v979 = vsel %vm611, %v912, %v914
      %v980 = vsel %vm611, %v914, %v916
      %v981 = vsel %vm611, %v918, %v920
      %v982 = vsel %vm611, %v920, %v922
      %v983 = vsel %vm611, %v924, %v926
      %v984 = vsel %vm611, %v926, %v928
      %v985 = vsel %vm611, %v930, %v932
      %v986 = vsel %vm611, %v932, %v934
      %v987 = vsel %vm611, %v936, %v938
      %v988 = vsel %vm611, %v938, %v940
      %v989 = vsel %vm611, %v942, %v944
      %v990 = vsel %vm611, %v944, %v946
      %v991 = vsel %vm611, %v948, %v950
      %v992 = vsel %vm611, %v950, %v952
      %v993 = vsel %vm611, %v954, %v956
      %v994 = vsel %vm611, %v956, %v958
      %vm1031 = vcmask 261120
      %v1033 = vsel %vm1031, %v837, 0
      %v1036 = vsel %vm1031, %v840, 0
      %1038 = vmatprep.subr.bf16.mxu0 %v960
      %1039 = vmatpush1.bf16.msra.mxu0 %v959
      %1040 = vmatprep.subr.bf16.mxu0 %v962
      %1041 = vmatpush1.bf16.msra.mxu0 %v961
      %1042 = vmatprep.subr.bf16.mxu0 %v964
      %1043 = vmatpush1.bf16.msra.mxu0 %v963
      %1044 = vmatprep.subr.bf16.mxu0 %v966
      %1045 = vmatpush1.bf16.msra.mxu0 %v965
      %1046 = vmatprep.subr.bf16.mxu0 %v968
      %1047 = vmatpush1.bf16.msra.mxu0 %v967
      %1048 = vmatprep.subr.bf16.mxu0 %v970
      %1049 = vmatpush1.bf16.msra.mxu0 %v969
      %1050 = vmatprep.subr.bf16.mxu0 %v972
      %1051 = vmatpush1.bf16.msra.mxu0 %v971
      %1052 = vmatprep.subr.bf16.mxu0 %v974
      %1053 = vmatpush1.bf16.msra.mxu0 %v973
      %1054 = vmatprep.subr.bf16.mxu0 %v976
      %1055 = vmatpush1.bf16.msra.mxu0 %v975
      %1056 = vmatprep.subr.bf16.mxu0 %v978
      %1057 = vmatpush1.bf16.msra.mxu0 %v977
      %1058 = vmatprep.subr.bf16.mxu0 %v980
      %1059 = vmatpush1.bf16.msra.mxu0 %v979
      %1060 = vmatprep.subr.bf16.mxu0 %v982
      %1061 = vmatpush1.bf16.msra.mxu0 %v981
      %1062 = vmatprep.subr.bf16.mxu0 %v984
      %1063 = vmatpush1.bf16.msra.mxu0 %v983
      %1064 = vmatprep.subr.bf16.mxu0 %v986
      %1065 = vmatpush1.bf16.msra.mxu0 %v985
      %1066 = vmatprep.subr.bf16.mxu0 %v988
      %1067 = vmatpush1.bf16.msra.mxu0 %v987
      %1068 = vmatprep.subr.bf16.mxu0 %v990
      %1069 = vmatpush1.bf16.msra.mxu0 %v989
      %1070 = vmatprep.mubr.bf16.mxu0 %v836
      %1071 = vmatmul.mubr.bf16.gmra.mrb[0].mxu0 %v835
      %v1072 = vpop.f32.mrb[0].mxu0
      %v1073 = vadd.f32 %v798, %v1072
      %v1074 = vpop.f32.mrb[0].mxu0
      %v1075 = vadd.f32 %v798, %v1074
      %v1076 = vpop.f32.mrb[0].mxu0
      %v1077 = vadd.f32 %v803, %v1076
      %v1078 = vpop.f32.mrb[0].mxu0
      %v1079 = vadd.f32 %v803, %v1078
      %1080 = vmatprep.mubr.bf16.mxu0 %v839
      %1081 = vmatmul.mubr.bf16.gmra.mrb[0].mxu0 %v838
      %v1082 = vpop.f32.mrb[0].mxu0
      %v1083 = vadd.f32 %v808, %v1082
      %v1084 = vpop.f32.mrb[0].mxu0
      %v1085 = vadd.f32 %v808, %v1084
      %v1086 = vpop.f32.mrb[0].mxu0
      %v1087 = vadd.f32 %v813, %v1086
      %v1088 = vpop.f32.mrb[0].mxu0
      %v1089 = vadd.f32 %v813, %v1088
      %1090 = vdwg.mxu0
      %1091 = vmatprep.subr.bf16.mxu0 %v992
      %1092 = vmatpush1.bf16.msra.mxu0 %v991
      %1093 = vmatprep.subr.bf16.mxu0 %v994
      %1094 = vmatpush1.bf16.msra.mxu0 %v993
      %1095 = vmatprep.subr.bf16.mxu0 0
      %1096 = vmatpush1.bf16.msra.mxu0 0
      %1097 = vmatprep.subr.bf16.mxu0 0
      %1098 = vmatpush1.bf16.msra.mxu0 0
      %1099 = vmatprep.subr.bf16.mxu0 0
      %1100 = vmatpush1.bf16.msra.mxu0 0
      %1101 = vmatprep.subr.bf16.mxu0 0
      %1102 = vmatpush1.bf16.msra.mxu0 0
      %1103 = vmatprep.subr.bf16.mxu0 0
      %1104 = vmatpush1.bf16.msra.mxu0 0
      %1105 = vmatprep.subr.bf16.mxu0 0
      %1106 = vmatpush1.bf16.msra.mxu0 0
      %1107 = vmatprep.subr.bf16.mxu0 0
      %1108 = vmatpush1.bf16.msra.mxu0 0
      %1109 = vmatprep.subr.bf16.mxu0 0
      %1110 = vmatpush1.bf16.msra.mxu0 0
      %1111 = vmatprep.subr.bf16.mxu0 0
      %1112 = vmatpush1.bf16.msra.mxu0 0
      %1113 = vmatprep.subr.bf16.mxu0 0
      %1114 = vmatpush1.bf16.msra.mxu0 0
      %1115 = vmatprep.subr.bf16.mxu0 0
      %1116 = vmatpush1.bf16.msra.mxu0 0
      %1117 = vmatprep.subr.bf16.mxu0 0
      %1118 = vmatpush1.bf16.msra.mxu0 0
      %1119 = vmatprep.subr.bf16.mxu0 0
      %1120 = vmatpush1.bf16.msra.mxu0 0
      %1121 = vmatprep.subr.bf16.mxu0 0
      %1122 = vmatpush1.bf16.msra.mxu0 0
      %1123 = vmatprep.mubr.bf16.mxu0 0
      %1124 = vmatmul.mubr.bf16.gmra.mrb[0].mxu0 %v1033
      %v1125 = vpop.f32.mrb[0].mxu0
      %v1126 = vadd.f32 %v1073, %v1125
      %v1127 = vpop.f32.mrb[0].mxu0
      %v1128 = vadd.f32 %v1075, %v1127
      %v1129 = vpop.f32.mrb[0].mxu0
      %v1130 = vadd.f32 %v1077, %v1129
      %v1131 = vpop.f32.mrb[0].mxu0
      %v1132 = vadd.f32 %v1079, %v1131
      %1133 = vmatprep.mubr.bf16.mxu0 0
      %1134 = vmatmul.mubr.bf16.gmra.mrb[0].mxu0 %v1036
      %v1135 = vpop.f32.mrb[0].mxu0
      %v1136 = vadd.f32 %v1083, %v1135
      %v1137 = vpop.f32.mrb[0].mxu0
      %v1138 = vadd.f32 %v1085, %v1137
      %v1139 = vpop.f32.mrb[0].mxu0
      %v1140 = vadd.f32 %v1087, %v1139
      %v1141 = vpop.f32.mrb[0].mxu0
      %v1142 = vadd.f32 %v1089, %v1141
      %1143 = vdwg.mxu0
      %v1144 = vmax.f32 %v1126, 0.0
      %v1145 = vmax.f32 %v1128, 0.0
      %v1146 = vmax.f32 %v1130, 0.0
      %v1147 = vmax.f32 %v1132, 0.0
      %v1148 = vmax.f32 %v1136, 0.0
      %v1149 = vmax.f32 %v1138, 0.0
      %v1150 = vmax.f32 %v1140, 0.0
      %v1151 = vmax.f32 %v1142, 0.0
      %v1152 = vpack.c.bf16 %v1146, %v1144
      %v1153 = vpack.c.bf16 %v1147, %v1145
      %v1154 = vpack.c.bf16 %v1150, %v1148
      %v1155 = vpack.c.bf16 %v1151, %v1149
      %1156 = vst [vmem:[#allocation2 + $0x8] sm:$0xff] %v1152
      %1157 = vst [vmem:[#allocation2 + $0x10] sm:$0xff] %v1153
      %1158 = vst [vmem:[#allocation2 + $0x28] sm:$0xff] %v1154
      %1159 = vst [vmem:[#allocation2 + $0x30] sm:$0xff] %v1155
      %v1160 = vld [vmem:[#allocation2] sm:$0xff]
      %v1161 = vld [vmem:[#allocation2 + $0x8] sm:$0xff]
      %v1162 = vld [vmem:[#allocation2 + $0x10] sm:$0xff]
      %v1163 = vld [vmem:[#allocation2 + $0x20] sm:$0xff]
      %v1164 = vld [vmem:[#allocation2 + $0x28] sm:$0xff]
      %v1165 = vld [vmem:[#allocation2 + $0x30] sm:$0xff]
      %v1166 = vld [vmem:[%s0] ss:$8 sm:$0x3]
      %vm1167 = vcmp.ne.f32.partialorder %v1166, 0.0
      %v1168 = vsel %vm1167, 1, 0
      %v1169 = vlaneseq
      %v1170 = vshrl.u32 %v1169, 7
      %v1171 = vsub.s32 0, %v1170
      %v1172 = vrot.slane %v1168, %v1171
      %v1173 = vlaneseq
      %v1174 = vshrl.u32 %v1173, 7
      %v1175 = vsub.s32 1, %v1174
      %v1176 = vrot.slane %v1168, %v1175
      %vm1177 = vcmp.eq.s32.totalorder %v1172, 1
      %vm1178 = vcmp.eq.s32.totalorder %v1176, 1
      %vm1179 = vmpackc.low %vm1178, %vm1177
      %v1180 = vsel %vm1179, 65537, 0
      %v1181 = vlaneseq
      %v1182 = vshrl.u32 %v1181, 7
      %v1183 = vsub.s32 0, %v1182
      %v1184 = vrot.slane %v1180, %v1183
      %v1185 = vlaneseq
      %v1186 = vshrl.u32 %v1185, 7
      %v1187 = vsub.s32 4, %v1186
      %v1188 = vrot.slane %v1180, %v1187
      %1189 = vrot.lane.b32.xlu0 %v1184, 111
      %v1190 = vpop.permute.xlu0 %1189
      %1191 = vrot.lane.b32.xlu0 %v1188, 111
      %v1192 = vpop.permute.xlu0 %1191
      %v1193 = vsel %vm332, %v1190, %v1192
      %vm1194 = vcmp.ne.s16.totalorder %v1190, 0
      %vm1195 = vcmp.ne.s16.totalorder %v1193, 0
      %vm1196 = vcmp.ne.s16.totalorder %v1192, 0
      %v1197 = vsel %vm1194, %v1160, 0
      %v1198 = vsel %vm1195, %v1161, 0
      %v1199 = vsel %vm1196, %v1162, 0
      %v1200 = vsel %vm1194, %v1163, 0
      %v1201 = vsel %vm1195, %v1164, 0
      %v1202 = vsel %vm1196, %v1165, 0
      %v1203 = vld [vmem:[%s343] ss:$8 sm:$0x3]
      %vm1204 = vcmp.ne.f32.partialorder %v1203, 0.0
      %v1205 = vsel %vm1204, 1, 0
      %v1206 = vlaneseq
      %v1207 = vshrl.u32 %v1206, 7
      %v1208 = vsub.s32 0, %v1207
      %v1209 = vrot.slane %v1205, %v1208
      %v1210 = vlaneseq
      %v1211 = vshrl.u32 %v1210, 7
      %v1212 = vsub.s32 1, %v1211
      %v1213 = vrot.slane %v1205, %v1212
      %vm1214 = vcmp.eq.s32.totalorder %v1209, 1
      %vm1215 = vcmp.eq.s32.totalorder %v1213, 1
      %vm1216 = vmpackc.low %vm1215, %vm1214
      %v1217 = vsel %vm1216, 65537, 0
      %v1218 = vlaneseq
      %v1219 = vshrl.u32 %v1218, 7
      %v1220 = vsub.s32 0, %v1219
      %v1221 = vrot.slane %v1217, %v1220
      %v1222 = vlaneseq
      %v1223 = vshrl.u32 %v1222, 7
      %v1224 = vsub.s32 4, %v1223
      %v1225 = vrot.slane %v1217, %v1224
      %1226 = vrot.lane.b32.xlu0 %v1221, 112
      %v1227 = vpop.permute.xlu0 %1226
      %1228 = vrot.lane.b32.xlu0 %v1225, 112
      %v1229 = vpop.permute.xlu0 %1228
      %v1230 = vsel %vm371, %v1227, %v1229
      %vm1231 = vcmp.ne.s16.totalorder %v1227, 0
      %vm1232 = vcmp.ne.s16.totalorder %v1230, 0
      %vm1233 = vcmp.ne.s16.totalorder %v1229, 0
      %v1234 = vsel %vm1231, %v1160, 0
      %v1235 = vsel %vm1232, %v1161, 0
      %v1236 = vsel %vm1233, %v1162, 0
      %v1237 = vsel %vm1231, %v1163, 0
      %v1238 = vsel %vm1232, %v1164, 0
      %v1239 = vsel %vm1233, %v1165, 0
      %v1240 = vld [vmem:[%s382] ss:$8 sm:$0x3]
      %vm1241 = vcmp.ne.f32.partialorder %v1240, 0.0
      %v1242 = vsel %vm1241, 1, 0
      %v1243 = vlaneseq
      %v1244 = vshrl.u32 %v1243, 7
      %v1245 = vsub.s32 0, %v1244
      %v1246 = vrot.slane %v1242, %v1245
      %v1247 = vlaneseq
      %v1248 = vshrl.u32 %v1247, 7
      %v1249 = vsub.s32 1, %v1248
      %v1250 = vrot.slane %v1242, %v1249
      %vm1251 = vcmp.eq.s32.totalorder %v1246, 1
      %vm1252 = vcmp.eq.s32.totalorder %v1250, 1
      %vm1253 = vmpackc.low %vm1252, %vm1251
      %v1254 = vsel %vm1253, 65537, 0
      %v1255 = vlaneseq
      %v1256 = vshrl.u32 %v1255, 7
      %v1257 = vsub.s32 0, %v1256
      %v1258 = vrot.slane %v1254, %v1257
      %v1259 = vlaneseq
      %v1260 = vshrl.u32 %v1259, 7
      %v1261 = vsub.s32 4, %v1260
      %v1262 = vrot.slane %v1254, %v1261
      %1263 = vrot.lane.b32.xlu0 %v1258, 113
      %v1264 = vpop.permute.xlu0 %1263
      %1265 = vrot.lane.b32.xlu0 %v1262, 113
      %v1266 = vpop.permute.xlu0 %1265
      %v1267 = vsel %vm410, %v1264, %v1266
      %vm1268 = vcmp.ne.s16.totalorder %v1264, 0
      %vm1269 = vcmp.ne.s16.totalorder %v1267, 0
      %vm1270 = vcmp.ne.s16.totalorder %v1266, 0
      %v1271 = vsel %vm1268, %v1160, 0
      %v1272 = vsel %vm1269, %v1161, 0
      %v1273 = vsel %vm1270, %v1162, 0
      %v1274 = vsel %vm1268, %v1163, 0
      %v1275 = vsel %vm1269, %v1164, 0
      %v1276 = vsel %vm1270, %v1165, 0
      %v1277 = vld [vmem:[%s421] ss:$8 sm:$0x3]
      %vm1278 = vcmp.ne.f32.partialorder %v1277, 0.0
      %v1279 = vsel %vm1278, 1, 0
      %v1280 = vlaneseq
      %v1281 = vshrl.u32 %v1280, 7
      %v1282 = vsub.s32 0, %v1281
      %v1283 = vrot.slane %v1279, %v1282
      %v1284 = vlaneseq
      %v1285 = vshrl.u32 %v1284, 7
      %v1286 = vsub.s32 1, %v1285
      %v1287 = vrot.slane %v1279, %v1286
      %vm1288 = vcmp.eq.s32.totalorder %v1283, 1
      %vm1289 = vcmp.eq.s32.totalorder %v1287, 1
      %vm1290 = vmpackc.low %vm1289, %vm1288
      %v1291 = vsel %vm1290, 65537, 0
      %v1292 = vlaneseq
      %v1293 = vshrl.u32 %v1292, 7
      %v1294 = vsub.s32 0, %v1293
      %v1295 = vrot.slane %v1291, %v1294
      %v1296 = vlaneseq
      %v1297 = vshrl.u32 %v1296, 7
      %v1298 = vsub.s32 4, %v1297
      %v1299 = vrot.slane %v1291, %v1298
      %1300 = vrot.lane.b32.xlu0 %v1295, 127
      %v1301 = vpop.permute.xlu0 %1300
      %1302 = vrot.lane.b32.xlu0 %v1299, 127
      %v1303 = vpop.permute.xlu0 %1302
      %v1304 = vsel %vm449, %v1301, %v1303
      %vm1305 = vcmp.ne.s16.totalorder %v1301, 0
      %vm1306 = vcmp.ne.s16.totalorder %v1304, 0
      %vm1307 = vcmp.ne.s16.totalorder %v1303, 0
      %v1308 = vsel %vm1305, %v1160, 0
      %v1309 = vsel %vm1306, %v1161, 0
      %v1310 = vsel %vm1307, %v1162, 0
      %v1311 = vsel %vm1305, %v1163, 0
      %v1312 = vsel %vm1306, %v1164, 0
      %v1313 = vsel %vm1307, %v1165, 0
      %v1314 = vld [vmem:[#allocation2 + $0x8] sm:$0xff]
      %v1315 = vld [vmem:[#allocation2 + $0x10] sm:$0xff]
      %v1316 = vld [vmem:[#allocation2 + $0x18] sm:$0xff]
      %v1317 = vld [vmem:[#allocation2 + $0x28] sm:$0xff]
      %v1318 = vld [vmem:[#allocation2 + $0x30] sm:$0xff]
      %v1319 = vld [vmem:[#allocation2 + $0x38] sm:$0xff]
      %v1320 = vld [vmem:[%s466] ss:$8 sm:$0x3]
      %vm1321 = vcmp.ne.f32.partialorder %v1320, 0.0
      %v1322 = vsel %vm1321, 1, 0
      %v1323 = vlaneseq
      %v1324 = vshrl.u32 %v1323, 7
      %v1325 = vsub.s32 0, %v1324
      %v1326 = vrot.slane %v1322, %v1325
      %v1327 = vlaneseq
      %v1328 = vshrl.u32 %v1327, 7
      %v1329 = vsub.s32 1, %v1328
      %v1330 = vrot.slane %v1322, %v1329
      %vm1331 = vcmp.eq.s32.totalorder %v1326, 1
      %vm1332 = vcmp.eq.s32.totalorder %v1330, 1
      %vm1333 = vmpackc.low %vm1332, %vm1331
      %v1334 = vsel %vm1333, 65537, 0
      %v1335 = vlaneseq
      %v1336 = vshrl.u32 %v1335, 7
      %v1337 = vsub.s32 0, %v1336
      %v1338 = vrot.slane %v1334, %v1337
      %v1339 = vlaneseq
      %v1340 = vshrl.u32 %v1339, 7
      %v1341 = vsub.s32 4, %v1340
      %v1342 = vrot.slane %v1334, %v1341
      %1343 = vrot.lane.b32.xlu0 %v1338, 1
      %v1344 = vpop.permute.xlu0 %1343
      %1345 = vrot.lane.b32.xlu0 %v1342, 1
      %v1346 = vpop.permute.xlu0 %1345
      %v1347 = vsel %vm494, %v1344, %v1346
      %vm1348 = vcmp.ne.s16.totalorder %v1344, 0
      %vm1349 = vcmp.ne.s16.totalorder %v1347, 0
      %vm1350 = vcmp.ne.s16.totalorder %v1346, 0
      %v1351 = vsel %vm1348, %v1314, 0
      %v1352 = vsel %vm1349, %v1315, 0
      %v1353 = vsel %vm1350, %v1316, 0
      %v1354 = vsel %vm1348, %v1317, 0
      %v1355 = vsel %vm1349, %v1318, 0
      %v1356 = vsel %vm1350, %v1319, 0
      %v1357 = vld [vmem:[%s505] ss:$8 sm:$0x3]
      %vm1358 = vcmp.ne.f32.partialorder %v1357, 0.0
      %v1359 = vsel %vm1358, 1, 0
      %v1360 = vlaneseq
      %v1361 = vshrl.u32 %v1360, 7
      %v1362 = vsub.s32 0, %v1361
      %v1363 = vrot.slane %v1359, %v1362
      %v1364 = vlaneseq
      %v1365 = vshrl.u32 %v1364, 7
      %v1366 = vsub.s32 1, %v1365
      %v1367 = vrot.slane %v1359, %v1366
      %vm1368 = vcmp.eq.s32.totalorder %v1363, 1
      %vm1369 = vcmp.eq.s32.totalorder %v1367, 1
      %vm1370 = vmpackc.low %vm1369, %vm1368
      %v1371 = vsel %vm1370, 65537, 0
      %v1372 = vlaneseq
      %v1373 = vshrl.u32 %v1372, 7
      %v1374 = vsub.s32 0, %v1373
      %v1375 = vrot.slane %v1371, %v1374
      %v1376 = vlaneseq
      %v1377 = vshrl.u32 %v1376, 7
      %v1378 = vsub.s32 4, %v1377
      %v1379 = vrot.slane %v1371, %v1378
      %1380 = vrot.lane.b32.xlu0 %v1375, 15
      %v1381 = vpop.permute.xlu0 %1380
      %1382 = vrot.lane.b32.xlu0 %v1379, 15
      %v1383 = vpop.permute.xlu0 %1382
      %v1384 = vsel %vm533, %v1381, %v1383
      %vm1385 = vcmp.ne.s16.totalorder %v1381, 0
      %vm1386 = vcmp.ne.s16.totalorder %v1384, 0
      %vm1387 = vcmp.ne.s16.totalorder %v1383, 0
      %v1388 = vsel %vm1385, %v1314, 0
      %v1389 = vsel %vm1386, %v1315, 0
      %v1390 = vsel %vm1387, %v1316, 0
      %v1391 = vsel %vm1385, %v1317, 0
      %v1392 = vsel %vm1386, %v1318, 0
      %v1393 = vsel %vm1387, %v1319, 0
      %v1394 = vld [vmem:[%s544] ss:$8 sm:$0x3]
      %vm1395 = vcmp.ne.f32.partialorder %v1394, 0.0
      %v1396 = vsel %vm1395, 1, 0
      %v1397 = vlaneseq
      %v1398 = vshrl.u32 %v1397, 7
      %v1399 = vsub.s32 0, %v1398
      %v1400 = vrot.slane %v1396, %v1399
      %v1401 = vlaneseq
      %v1402 = vshrl.u32 %v1401, 7
      %v1403 = vsub.s32 1, %v1402
      %v1404 = vrot.slane %v1396, %v1403
      %vm1405 = vcmp.eq.s32.totalorder %v1400, 1
      %vm1406 = vcmp.eq.s32.totalorder %v1404, 1
      %vm1407 = vmpackc.low %vm1406, %vm1405
      %v1408 = vsel %vm1407, 65537, 0
      %v1409 = vlaneseq
      %v1410 = vshrl.u32 %v1409, 7
      %v1411 = vsub.s32 0, %v1410
      %v1412 = vrot.slane %v1408, %v1411
      %v1413 = vlaneseq
      %v1414 = vshrl.u32 %v1413, 7
      %v1415 = vsub.s32 4, %v1414
      %v1416 = vrot.slane %v1408, %v1415
      %1417 = vrot.lane.b32.xlu0 %v1412, 16
      %v1418 = vpop.permute.xlu0 %1417
      %1419 = vrot.lane.b32.xlu0 %v1416, 16
      %v1420 = vpop.permute.xlu0 %1419
      %v1421 = vsel %vm572, %v1418, %v1420
      %vm1422 = vcmp.ne.s16.totalorder %v1418, 0
      %vm1423 = vcmp.ne.s16.totalorder %v1421, 0
      %vm1424 = vcmp.ne.s16.totalorder %v1420, 0
      %v1425 = vsel %vm1422, %v1314, 0
      %v1426 = vsel %vm1423, %v1315, 0
      %v1427 = vsel %vm1424, %v1316, 0
      %v1428 = vsel %vm1422, %v1317, 0
      %v1429 = vsel %vm1423, %v1318, 0
      %v1430 = vsel %vm1424, %v1319, 0
      %v1431 = vld [vmem:[%s583] ss:$8 sm:$0x3]
      %vm1432 = vcmp.ne.f32.partialorder %v1431, 0.0
      %v1433 = vsel %vm1432, 1, 0
      %v1434 = vlaneseq
      %v1435 = vshrl.u32 %v1434, 7
      %v1436 = vsub.s32 0, %v1435
      %v1437 = vrot.slane %v1433, %v1436
      %v1438 = vlaneseq
      %v1439 = vshrl.u32 %v1438, 7
      %v1440 = vsub.s32 1, %v1439
      %v1441 = vrot.slane %v1433, %v1440
      %vm1442 = vcmp.eq.s32.totalorder %v1437, 1
      %vm1443 = vcmp.eq.s32.totalorder %v1441, 1
      %vm1444 = vmpackc.low %vm1443, %vm1442
      %v1445 = vsel %vm1444, 65537, 0
      %v1446 = vlaneseq
      %v1447 = vshrl.u32 %v1446, 7
      %v1448 = vsub.s32 0, %v1447
      %v1449 = vrot.slane %v1445, %v1448
      %v1450 = vlaneseq
      %v1451 = vshrl.u32 %v1450, 7
      %v1452 = vsub.s32 4, %v1451
      %v1453 = vrot.slane %v1445, %v1452
      %1454 = vrot.lane.b32.xlu0 %v1449, 17
      %v1455 = vpop.permute.xlu0 %1454
      %1456 = vrot.lane.b32.xlu0 %v1453, 17
      %v1457 = vpop.permute.xlu0 %1456
      %v1458 = vsel %vm611, %v1455, %v1457
      %vm1459 = vcmp.ne.s16.totalorder %v1455, 0
      %vm1460 = vcmp.ne.s16.totalorder %v1458, 0
      %vm1461 = vcmp.ne.s16.totalorder %v1457, 0
      %v1462 = vsel %vm1459, %v1314, 0
      %v1463 = vsel %vm1460, %v1315, 0
      %v1464 = vsel %vm1461, %v1316, 0
      %v1465 = vsel %vm1459, %v1317, 0
      %v1466 = vsel %vm1460, %v1318, 0
      %v1467 = vsel %vm1461, %v1319, 0
      %1474 = vrot.lane.b32.xlu0 %v1234, 127
      %v1475 = vpop.permute.xlu0 %1474
      %1476 = vrot.lane.b32.xlu0 %v1235, 127
      %v1477 = vpop.permute.xlu0 %1476
      %1478 = vrot.lane.b32.xlu0 %v1236, 127
      %v1479 = vpop.permute.xlu0 %1478
      %1480 = vrot.lane.b32.xlu0 %v1237, 127
      %v1481 = vpop.permute.xlu0 %1480
      %1482 = vrot.lane.b32.xlu0 %v1238, 127
      %v1483 = vpop.permute.xlu0 %1482
      %1484 = vrot.lane.b32.xlu0 %v1239, 127
      %v1485 = vpop.permute.xlu0 %1484
      %v1486 = vsel %vm449, %v1475, %v1477
      %v1487 = vsel %vm449, %v1477, %v1479
      %v1488 = vsel %vm449, %v1481, %v1483
      %v1489 = vsel %vm449, %v1483, %v1485
      %1496 = vrot.lane.b32.xlu0 %v1271, 126
      %v1497 = vpop.permute.xlu0 %1496
      %1498 = vrot.lane.b32.xlu0 %v1272, 126
      %v1499 = vpop.permute.xlu0 %1498
      %1500 = vrot.lane.b32.xlu0 %v1273, 126
      %v1501 = vpop.permute.xlu0 %1500
      %1502 = vrot.lane.b32.xlu0 %v1274, 126
      %v1503 = vpop.permute.xlu0 %1502
      %1504 = vrot.lane.b32.xlu0 %v1275, 126
      %v1505 = vpop.permute.xlu0 %1504
      %1506 = vrot.lane.b32.xlu0 %v1276, 126
      %v1507 = vpop.permute.xlu0 %1506
      %v1508 = vsel %vm662, %v1497, %v1499
      %v1509 = vsel %vm662, %v1499, %v1501
      %v1510 = vsel %vm662, %v1503, %v1505
      %v1511 = vsel %vm662, %v1505, %v1507
      %1518 = vrot.lane.b32.xlu0 %v1308, 112
      %v1519 = vpop.permute.xlu0 %1518
      %1520 = vrot.lane.b32.xlu0 %v1309, 112
      %v1521 = vpop.permute.xlu0 %1520
      %1522 = vrot.lane.b32.xlu0 %v1310, 112
      %v1523 = vpop.permute.xlu0 %1522
      %1524 = vrot.lane.b32.xlu0 %v1311, 112
      %v1525 = vpop.permute.xlu0 %1524
      %1526 = vrot.lane.b32.xlu0 %v1312, 112
      %v1527 = vpop.permute.xlu0 %1526
      %1528 = vrot.lane.b32.xlu0 %v1313, 112
      %v1529 = vpop.permute.xlu0 %1528
      %v1530 = vsel %vm371, %v1519, %v1521
      %v1531 = vsel %vm371, %v1521, %v1523
      %v1532 = vsel %vm371, %v1525, %v1527
      %v1533 = vsel %vm371, %v1527, %v1529
      %1538 = vrot.lane.b32.xlu0 %v1161, 111
      %v1539 = vpop.permute.xlu0 %1538
      %1540 = vrot.lane.b32.xlu0 %v1162, 111
      %v1541 = vpop.permute.xlu0 %1540
      %1542 = vrot.lane.b32.xlu0 %v1164, 111
      %v1543 = vpop.permute.xlu0 %1542
      %1544 = vrot.lane.b32.xlu0 %v1165, 111
      %v1545 = vpop.permute.xlu0 %1544
      %v1546 = vsel %vm332, %v1539, %v1541
      %v1547 = vsel %vm332, %v1543, %v1545
      %1554 = vrot.lane.b32.xlu0 %v1351, 110
      %v1555 = vpop.permute.xlu0 %1554
      %1556 = vrot.lane.b32.xlu0 %v1352, 110
      %v1557 = vpop.permute.xlu0 %1556
      %1558 = vrot.lane.b32.xlu0 %v1353, 110
      %v1559 = vpop.permute.xlu0 %1558
      %1560 = vrot.lane.b32.xlu0 %v1354, 110
      %v1561 = vpop.permute.xlu0 %1560
      %1562 = vrot.lane.b32.xlu0 %v1355, 110
      %v1563 = vpop.permute.xlu0 %1562
      %1564 = vrot.lane.b32.xlu0 %v1356, 110
      %v1565 = vpop.permute.xlu0 %1564
      %v1566 = vsel %vm721, %v1555, %v1557
      %v1567 = vsel %vm721, %v1557, %v1559
      %v1568 = vsel %vm721, %v1561, %v1563
      %v1569 = vsel %vm721, %v1563, %v1565
      %1576 = vrot.lane.b32.xlu0 %v1388, 96
      %v1577 = vpop.permute.xlu0 %1576
      %1578 = vrot.lane.b32.xlu0 %v1389, 96
      %v1579 = vpop.permute.xlu0 %1578
      %1580 = vrot.lane.b32.xlu0 %v1390, 96
      %v1581 = vpop.permute.xlu0 %1580
      %1582 = vrot.lane.b32.xlu0 %v1391, 96
      %v1583 = vpop.permute.xlu0 %1582
      %1584 = vrot.lane.b32.xlu0 %v1392, 96
      %v1585 = vpop.permute.xlu0 %1584
      %1586 = vrot.lane.b32.xlu0 %v1393, 96
      %v1587 = vpop.permute.xlu0 %1586
      %v1588 = vsel %vm744, %v1577, %v1579
      %v1589 = vsel %vm744, %v1579, %v1581
      %v1590 = vsel %vm744, %v1583, %v1585
      %v1591 = vsel %vm744, %v1585, %v1587
      %1598 = vrot.lane.b32.xlu0 %v1425, 95
      %v1599 = vpop.permute.xlu0 %1598
      %1600 = vrot.lane.b32.xlu0 %v1426, 95
      %v1601 = vpop.permute.xlu0 %1600
      %1602 = vrot.lane.b32.xlu0 %v1427, 95
      %v1603 = vpop.permute.xlu0 %1602
      %1604 = vrot.lane.b32.xlu0 %v1428, 95
      %v1605 = vpop.permute.xlu0 %1604
      %1606 = vrot.lane.b32.xlu0 %v1429, 95
      %v1607 = vpop.permute.xlu0 %1606
      %1608 = vrot.lane.b32.xlu0 %v1430, 95
      %v1609 = vpop.permute.xlu0 %1608
      %v1610 = vsel %vm767, %v1599, %v1601
      %v1611 = vsel %vm767, %v1601, %v1603
      %v1612 = vsel %vm767, %v1605, %v1607
      %v1613 = vsel %vm767, %v1607, %v1609
      %1620 = vrot.lane.b32.xlu0 %v1462, 94
      %v1621 = vpop.permute.xlu0 %1620
      %1622 = vrot.lane.b32.xlu0 %v1463, 94
      %v1623 = vpop.permute.xlu0 %1622
      %1624 = vrot.lane.b32.xlu0 %v1464, 94
      %v1625 = vpop.permute.xlu0 %1624
      %1626 = vrot.lane.b32.xlu0 %v1465, 94
      %v1627 = vpop.permute.xlu0 %1626
      %1628 = vrot.lane.b32.xlu0 %v1466, 94
      %v1629 = vpop.permute.xlu0 %1628
      %1630 = vrot.lane.b32.xlu0 %v1467, 94
      %v1631 = vpop.permute.xlu0 %1630
      %v1632 = vsel %vm790, %v1621, %v1623
      %v1633 = vsel %vm790, %v1623, %v1625
      %v1634 = vsel %vm790, %v1627, %v1629
      %v1635 = vsel %vm790, %v1629, %v1631
      %1637 = vset.pattern.permute.xlu0 0
      %1638 = vperm.xlu0 %1637, %v283
      %v1639 = vpop.permute.xlu0 %1638
      %1642 = vset.pattern.permute.xlu0 0
      %1643 = vperm.xlu0 %1642, %v284
      %v1644 = vpop.permute.xlu0 %1643
      %1647 = vset.pattern.permute.xlu0 0
      %1648 = vperm.xlu0 %1647, %v285
      %v1649 = vpop.permute.xlu0 %1648
      %1652 = vset.pattern.permute.xlu0 0
      %1653 = vperm.xlu0 %1652, %v286
      %v1654 = vpop.permute.xlu0 %1653
      %v1664 = vunpack.c.l.b16 %v271
      %v1665 = vunpack.c.h.b16 %v271
      %v1666 = vunpack.c.l.b16 %v272
      %v1667 = vunpack.c.l.b16 %v273
      %v1668 = vunpack.c.h.b16 %v273
      %v1669 = vunpack.c.l.b16 %v274
      %v1670 = vunpack.c.l.b16 %v275
      %v1671 = vunpack.c.h.b16 %v275
      %v1672 = vunpack.c.l.b16 %v276
      %v1673 = vunpack.c.l.b16 %v277
      %v1674 = vunpack.c.h.b16 %v277
      %v1675 = vunpack.c.l.b16 %v278
      %v1676 = vpack.c.b16 %v1667, %v1664
      %v1677 = vpack.c.b16 %v1668, %v1665
      %v1678 = vpack.c.b16 %v1669, %v1666
      %v1679 = vpack.c.b16 %v1673, %v1670
      %v1680 = vpack.c.b16 %v1674, %v1671
      %v1681 = vpack.c.b16 %v1675, %v1672
      %1692 = vrot.lane.b32.xlu0 %v1197, 17
      %v1693 = vpop.permute.xlu0 %1692
      %1694 = vrot.lane.b32.xlu0 %v1198, 17
      %v1695 = vpop.permute.xlu0 %1694
      %1696 = vrot.lane.b32.xlu0 %v1199, 17
      %v1697 = vpop.permute.xlu0 %1696
      %1698 = vrot.lane.b32.xlu0 %v1200, 17
      %v1699 = vpop.permute.xlu0 %1698
      %1700 = vrot.lane.b32.xlu0 %v1201, 17
      %v1701 = vpop.permute.xlu0 %1700
      %1702 = vrot.lane.b32.xlu0 %v1202, 17
      %v1703 = vpop.permute.xlu0 %1702
      %1704 = vrot.lane.b32.xlu0 %v1486, 17
      %v1705 = vpop.permute.xlu0 %1704
      %1706 = vrot.lane.b32.xlu0 %v1487, 17
      %v1707 = vpop.permute.xlu0 %1706
      %1708 = vrot.lane.b32.xlu0 %v1479, 17
      %v1709 = vpop.permute.xlu0 %1708
      %1710 = vrot.lane.b32.xlu0 %v1488, 17
      %v1711 = vpop.permute.xlu0 %1710
      %1712 = vrot.lane.b32.xlu0 %v1489, 17
      %v1713 = vpop.permute.xlu0 %1712
      %1714 = vrot.lane.b32.xlu0 %v1485, 17
      %v1715 = vpop.permute.xlu0 %1714
      %1716 = vrot.lane.b32.xlu0 %v1508, 17
      %v1717 = vpop.permute.xlu0 %1716
      %1718 = vrot.lane.b32.xlu0 %v1509, 17
      %v1719 = vpop.permute.xlu0 %1718
      %1720 = vrot.lane.b32.xlu0 %v1501, 17
      %v1721 = vpop.permute.xlu0 %1720
      %1722 = vrot.lane.b32.xlu0 %v1510, 17
      %v1723 = vpop.permute.xlu0 %1722
      %1724 = vrot.lane.b32.xlu0 %v1511, 17
      %v1725 = vpop.permute.xlu0 %1724
      %1726 = vrot.lane.b32.xlu0 %v1507, 17
      %v1727 = vpop.permute.xlu0 %1726
      %1728 = vrot.lane.b32.xlu0 %v1530, 17
      %v1729 = vpop.permute.xlu0 %1728
      %1730 = vrot.lane.b32.xlu0 %v1531, 17
      %v1731 = vpop.permute.xlu0 %1730
      %1732 = vrot.lane.b32.xlu0 %v1523, 17
      %v1733 = vpop.permute.xlu0 %1732
      %1734 = vrot.lane.b32.xlu0 %v1532, 17
      %v1735 = vpop.permute.xlu0 %1734
      %1736 = vrot.lane.b32.xlu0 %v1533, 17
      %v1737 = vpop.permute.xlu0 %1736
      %1738 = vrot.lane.b32.xlu0 %v1529, 17
      %v1739 = vpop.permute.xlu0 %1738
      %1740 = vrot.lane.b32.xlu0 %v1539, 17
      %v1741 = vpop.permute.xlu0 %1740
      %1742 = vrot.lane.b32.xlu0 %v1546, 17
      %v1743 = vpop.permute.xlu0 %1742
      %1744 = vrot.lane.b32.xlu0 %v1541, 17
      %v1745 = vpop.permute.xlu0 %1744
      %1746 = vrot.lane.b32.xlu0 %v1543, 17
      %v1747 = vpop.permute.xlu0 %1746
      %1748 = vrot.lane.b32.xlu0 %v1547, 17
      %v1749 = vpop.permute.xlu0 %1748
      %1750 = vrot.lane.b32.xlu0 %v1545, 17
      %v1751 = vpop.permute.xlu0 %1750
      %1752 = vrot.lane.b32.xlu0 %v1555, 17
      %v1753 = vpop.permute.xlu0 %1752
      %1754 = vrot.lane.b32.xlu0 %v1566, 17
      %v1755 = vpop.permute.xlu0 %1754
      %1756 = vrot.lane.b32.xlu0 %v1567, 17
      %v1757 = vpop.permute.xlu0 %1756
      %1758 = vrot.lane.b32.xlu0 %v1561, 17
      %v1759 = vpop.permute.xlu0 %1758
      %1760 = vrot.lane.b32.xlu0 %v1568, 17
      %v1761 = vpop.permute.xlu0 %1760
      %1762 = vrot.lane.b32.xlu0 %v1569, 17
      %v1763 = vpop.permute.xlu0 %1762
      %1764 = vrot.lane.b32.xlu0 %v1577, 17
      %v1765 = vpop.permute.xlu0 %1764
      %1766 = vrot.lane.b32.xlu0 %v1588, 17
      %v1767 = vpop.permute.xlu0 %1766
      %1768 = vrot.lane.b32.xlu0 %v1589, 17
      %v1769 = vpop.permute.xlu0 %1768
      %1770 = vrot.lane.b32.xlu0 %v1583, 17
      %v1771 = vpop.permute.xlu0 %1770
      %1772 = vrot.lane.b32.xlu0 %v1590, 17
      %v1773 = vpop.permute.xlu0 %1772
      %1774 = vrot.lane.b32.xlu0 %v1591, 17
      %v1775 = vpop.permute.xlu0 %1774
      %1776 = vrot.lane.b32.xlu0 %v1599, 17
      %v1777 = vpop.permute.xlu0 %1776
      %1778 = vrot.lane.b32.xlu0 %v1610, 17
      %v1779 = vpop.permute.xlu0 %1778
      %1780 = vrot.lane.b32.xlu0 %v1611, 17
      %v1781 = vpop.permute.xlu0 %1780
      %1782 = vrot.lane.b32.xlu0 %v1605, 17
      %v1783 = vpop.permute.xlu0 %1782
      %1784 = vrot.lane.b32.xlu0 %v1612, 17
      %v1785 = vpop.permute.xlu0 %1784
      %1786 = vrot.lane.b32.xlu0 %v1613, 17
      %v1787 = vpop.permute.xlu0 %1786
      %1788 = vrot.lane.b32.xlu0 %v1621, 17
      %v1789 = vpop.permute.xlu0 %1788
      %1790 = vrot.lane.b32.xlu0 %v1632, 17
      %v1791 = vpop.permute.xlu0 %1790
      %1792 = vrot.lane.b32.xlu0 %v1633, 17
      %v1793 = vpop.permute.xlu0 %1792
      %1794 = vrot.lane.b32.xlu0 %v1627, 17
      %v1795 = vpop.permute.xlu0 %1794
      %1796 = vrot.lane.b32.xlu0 %v1634, 17
      %v1797 = vpop.permute.xlu0 %1796
      %1798 = vrot.lane.b32.xlu0 %v1635, 17
      %v1799 = vpop.permute.xlu0 %1798
      %v1800 = vsel %vm611, %v1693, %v1695
      %v1801 = vsel %vm611, %v1695, %v1697
      %v1802 = vsel %vm611, %v1699, %v1701
      %v1803 = vsel %vm611, %v1701, %v1703
      %v1804 = vsel %vm611, %v1705, %v1707
      %v1805 = vsel %vm611, %v1707, %v1709
      %v1806 = vsel %vm611, %v1711, %v1713
      %v1807 = vsel %vm611, %v1713, %v1715
      %v1808 = vsel %vm611, %v1717, %v1719
      %v1809 = vsel %vm611, %v1719, %v1721
      %v1810 = vsel %vm611, %v1723, %v1725
      %v1811 = vsel %vm611, %v1725, %v1727
      %v1812 = vsel %vm611, %v1729, %v1731
      %v1813 = vsel %vm611, %v1731, %v1733
      %v1814 = vsel %vm611, %v1735, %v1737
      %v1815 = vsel %vm611, %v1737, %v1739
      %v1816 = vsel %vm611, %v1741, %v1743
      %v1817 = vsel %vm611, %v1743, %v1745
      %v1818 = vsel %vm611, %v1747, %v1749
      %v1819 = vsel %vm611, %v1749, %v1751
      %v1820 = vsel %vm611, %v1753, %v1755
      %v1821 = vsel %vm611, %v1755, %v1757
      %v1822 = vsel %vm611, %v1759, %v1761
      %v1823 = vsel %vm611, %v1761, %v1763
      %v1824 = vsel %vm611, %v1765, %v1767
      %v1825 = vsel %vm611, %v1767, %v1769
      %v1826 = vsel %vm611, %v1771, %v1773
      %v1827 = vsel %vm611, %v1773, %v1775
      %v1828 = vsel %vm611, %v1777, %v1779
      %v1829 = vsel %vm611, %v1779, %v1781
      %v1830 = vsel %vm611, %v1783, %v1785
      %v1831 = vsel %vm611, %v1785, %v1787
      %v1832 = vsel %vm611, %v1789, %v1791
      %v1833 = vsel %vm611, %v1791, %v1793
      %v1834 = vsel %vm611, %v1795, %v1797
      %v1835 = vsel %vm611, %v1797, %v1799
      %v1873 = vsel %vm1031, %v1678, 0
      %v1876 = vsel %vm1031, %v1681, 0
      %1878 = vmatprep.subr.bf16.mxu0 %v1801
      %1879 = vmatpush1.bf16.msra.mxu0 %v1800
      %1880 = vmatprep.subr.bf16.mxu0 %v1803
      %1881 = vmatpush1.bf16.msra.mxu0 %v1802
      %1882 = vmatprep.subr.bf16.mxu0 %v1805
      %1883 = vmatpush1.bf16.msra.mxu0 %v1804
      %1884 = vmatprep.subr.bf16.mxu0 %v1807
      %1885 = vmatpush1.bf16.msra.mxu0 %v1806
      %1886 = vmatprep.subr.bf16.mxu0 %v1809
      %1887 = vmatpush1.bf16.msra.mxu0 %v1808
      %1888 = vmatprep.subr.bf16.mxu0 %v1811
      %1889 = vmatpush1.bf16.msra.mxu0 %v1810
      %1890 = vmatprep.subr.bf16.mxu0 %v1813
      %1891 = vmatpush1.bf16.msra.mxu0 %v1812
      %1892 = vmatprep.subr.bf16.mxu0 %v1815
      %1893 = vmatpush1.bf16.msra.mxu0 %v1814
      %1894 = vmatprep.subr.bf16.mxu0 %v1817
      %1895 = vmatpush1.bf16.msra.mxu0 %v1816
      %1896 = vmatprep.subr.bf16.mxu0 %v1819
      %1897 = vmatpush1.bf16.msra.mxu0 %v1818
      %1898 = vmatprep.subr.bf16.mxu0 %v1821
      %1899 = vmatpush1.bf16.msra.mxu0 %v1820
      %1900 = vmatprep.subr.bf16.mxu0 %v1823
      %1901 = vmatpush1.bf16.msra.mxu0 %v1822
      %1902 = vmatprep.subr.bf16.mxu0 %v1825
      %1903 = vmatpush1.bf16.msra.mxu0 %v1824
      %1904 = vmatprep.subr.bf16.mxu0 %v1827
      %1905 = vmatpush1.bf16.msra.mxu0 %v1826
      %1906 = vmatprep.subr.bf16.mxu0 %v1829
      %1907 = vmatpush1.bf16.msra.mxu0 %v1828
      %1908 = vmatprep.subr.bf16.mxu0 %v1831
      %1909 = vmatpush1.bf16.msra.mxu0 %v1830
      %1910 = vmatprep.mubr.bf16.mxu0 %v1677
      %1911 = vmatmul.mubr.bf16.gmra.mrb[0].mxu0 %v1676
      %v1912 = vpop.f32.mrb[0].mxu0
      %v1913 = vadd.f32 %v1639, %v1912
      %v1914 = vpop.f32.mrb[0].mxu0
      %v1915 = vadd.f32 %v1639, %v1914
      %v1916 = vpop.f32.mrb[0].mxu0
      %v1917 = vadd.f32 %v1644, %v1916
      %v1918 = vpop.f32.mrb[0].mxu0
      %v1919 = vadd.f32 %v1644, %v1918
      %1920 = vmatprep.mubr.bf16.mxu0 %v1680
      %1921 = vmatmul.mubr.bf16.gmra.mrb[0].mxu0 %v1679
      %v1922 = vpop.f32.mrb[0].mxu0
      %v1923 = vadd.f32 %v1649, %v1922
      %v1924 = vpop.f32.mrb[0].mxu0
      %v1925 = vadd.f32 %v1649, %v1924
      %v1926 = vpop.f32.mrb[0].mxu0
      %v1927 = vadd.f32 %v1654, %v1926
      %v1928 = vpop.f32.mrb[0].mxu0
      %v1929 = vadd.f32 %v1654, %v1928
      %1930 = vdwg.mxu0
      %1931 = vmatprep.subr.bf16.mxu0 %v1833
      %1932 = vmatpush1.bf16.msra.mxu0 %v1832
      %1933 = vmatprep.subr.bf16.mxu0 %v1835
      %1934 = vmatpush1.bf16.msra.mxu0 %v1834
      %1935 = vmatprep.subr.bf16.mxu0 0
      %1936 = vmatpush1.bf16.msra.mxu0 0
      %1937 = vmatprep.subr.bf16.mxu0 0
      %1938 = vmatpush1.bf16.msra.mxu0 0
      %1939 = vmatprep.subr.bf16.mxu0 0
      %1940 = vmatpush1.bf16.msra.mxu0 0
      %1941 = vmatprep.subr.bf16.mxu0 0
      %1942 = vmatpush1.bf16.msra.mxu0 0
      %1943 = vmatprep.subr.bf16.mxu0 0
      %1944 = vmatpush1.bf16.msra.mxu0 0
      %1945 = vmatprep.subr.bf16.mxu0 0
      %1946 = vmatpush1.bf16.msra.mxu0 0
      %1947 = vmatprep.subr.bf16.mxu0 0
      %1948 = vmatpush1.bf16.msra.mxu0 0
      %1949 = vmatprep.subr.bf16.mxu0 0
      %1950 = vmatpush1.bf16.msra.mxu0 0
      %1951 = vmatprep.subr.bf16.mxu0 0
      %1952 = vmatpush1.bf16.msra.mxu0 0
      %1953 = vmatprep.subr.bf16.mxu0 0
      %1954 = vmatpush1.bf16.msra.mxu0 0
      %1955 = vmatprep.subr.bf16.mxu0 0
      %1956 = vmatpush1.bf16.msra.mxu0 0
      %1957 = vmatprep.subr.bf16.mxu0 0
      %1958 = vmatpush1.bf16.msra.mxu0 0
      %1959 = vmatprep.subr.bf16.mxu0 0
      %1960 = vmatpush1.bf16.msra.mxu0 0
      %1961 = vmatprep.subr.bf16.mxu0 0
      %1962 = vmatpush1.bf16.msra.mxu0 0
      %1963 = vmatprep.mubr.bf16.mxu0 0
      %1964 = vmatmul.mubr.bf16.gmra.mrb[0].mxu0 %v1873
      %v1965 = vpop.f32.mrb[0].mxu0
      %v1966 = vadd.f32 %v1913, %v1965
      %v1967 = vpop.f32.mrb[0].mxu0
      %v1968 = vadd.f32 %v1915, %v1967
      %v1969 = vpop.f32.mrb[0].mxu0
      %v1970 = vadd.f32 %v1917, %v1969
      %v1971 = vpop.f32.mrb[0].mxu0
      %v1972 = vadd.f32 %v1919, %v1971
      %1973 = vmatprep.mubr.bf16.mxu0 0
      %1974 = vmatmul.mubr.bf16.gmra.mrb[0].mxu0 %v1876
      %v1975 = vpop.f32.mrb[0].mxu0
      %v1976 = vadd.f32 %v1923, %v1975
      %v1977 = vpop.f32.mrb[0].mxu0
      %v1978 = vadd.f32 %v1925, %v1977
      %v1979 = vpop.f32.mrb[0].mxu0
      %v1980 = vadd.f32 %v1927, %v1979
      %v1981 = vpop.f32.mrb[0].mxu0
      %v1982 = vadd.f32 %v1929, %v1981
      %1983 = vdwg.mxu0
      %v1984 = vmax.f32 %v1966, 0.0
      %v1985 = vmax.f32 %v1968, 0.0
      %v1986 = vmax.f32 %v1970, 0.0
      %v1987 = vmax.f32 %v1972, 0.0
      %v1988 = vmax.f32 %v1976, 0.0
      %v1989 = vmax.f32 %v1978, 0.0
      %v1990 = vmax.f32 %v1980, 0.0
      %v1991 = vmax.f32 %v1982, 0.0
      %v1992 = vadd.f32 %v1984, %v255
      %v1993 = vadd.f32 %v1985, %v256
      %v1994 = vadd.f32 %v1986, %v257
      %v1995 = vadd.f32 %v1987, %v258
      %v1996 = vadd.f32 %v1988, %v259
      %v1997 = vadd.f32 %v1989, %v260
      %v1998 = vadd.f32 %v1990, %v261
      %v1999 = vadd.f32 %v1991, %v262
      %2000 = vst [vmem:[%s251] sm:$0xff] %v1992
      %2001 = vst [vmem:[%s251 + $0x8] sm:$0xff] %v1993
      %2002 = vst [vmem:[%s251 + $0x10] sm:$0xff] %v1994
      %2003 = vst [vmem:[%s251 + $0x18] sm:$0xff] %v1995
      %2004 = vst [vmem:[%s251 + $0x20] sm:$0xff] %v1996
      %2005 = vst [vmem:[%s251 + $0x28] sm:$0xff] %v1997
      %2006 = vst [vmem:[%s251 + $0x30] sm:$0xff] %v1998
      %2007 = vst [vmem:[%s251 + $0x38] sm:$0xff] %v1999
      %p2008 = scmp.lt.s32.totalorder %s17, 1
      %s2009 = scalar_select %p2008, %s17, 1
      %s2010 = smul.addr %s2009, 8
      %s2011 = smul.addr %s2010, 8
      %s2012 = scalar_lea.vmem %s6, %s2011
      // Predicated region
      $region45: #{resblock_forward.1} parent=43 // pred_check
        %p2013 = pneg %p166
      $region46: #{resblock_forward.1} parent=43 // pred_check_branch
        %2015 = sbr.rel (%p2013) target = $region48
      $region47: #{resblock_forward.1} parent=43 // pred_region
        _
      $region48: #{resblock_forward.1} parent=43 // pred_fallthru
        _
    $region44: #{resblock_forward.1} parent=5 // pred_fallthru
      _
    %p2016 = scmp.le.s32.totalorder 2, %s12
    // Predicated region
    $region49: #{resblock_forward.1} parent=5 // pred_check
      %p2017 = pneg %p2016
    $region50: #{resblock_forward.1} parent=5 // pred_check_branch
      %2019 = sbr.rel (%p2017) target = $region52
    $region51: #{resblock_forward.1} parent=5 // pred_region
      %s2020 = ssub.s32 %s12, 2
      // Predicated region
      $region53: #{resblock_forward.1} parent=51 // pred_check
        %p2021 = pneg %p172
      $region54: #{resblock_forward.1} parent=51 // pred_check_branch
        %2023 = sbr.rel (%p2021) target = $region56
      $region55: #{resblock_forward.1} parent=51 // pred_region
        %p2024 = scmp.lt.s32.totalorder %s18, 1
        %s2025 = scalar_select %p2024, %s18, 1
        %s2026 = smul.addr %s2025, 8
        %s2027 = smul.addr %s2026, 8
        %s2028 = scalar_lea.vmem %s6, %s2027
      $region56: #{resblock_forward.1} parent=51 // pred_fallthru
        _
    $region52: #{resblock_forward.1} parent=5 // pred_fallthru
      _
  $region6: #{resblock_forward.1} parent=0 // loop_footer
    %s16 = sadd.s32 1, %s12
  $region7: #{resblock_forward.1} parent=0 // loop_footer_branch
    %11 = sbr.rel target = $region3
  $region8: #{resblock_forward.1} parent=0 // loop_exit
    _

</llo_original>
